<compile_context>
chip_gen: v5e
topology: v5e:2x2
jax: 0.10.0
libtpu: 0.0.40
codegen_flags: <defaults>
</compile_context>

<pallas_src>
import jax
import jax.numpy as jnp
from jax.experimental import pallas as pl
from jax.experimental.pallas import tpu as pltpu


# (in_channels, out_channels, stride) for the 6 conv layers (all k=3, pad=0).
_LAYER_CFG = [
    (1, 4, 2),
    (4, 8, 2),
    (8, 16, 2),
    (16, 32, 1),
    (32, 64, 1),
    (64, 128, 1),
]
_LAYER_ACT = ["relu", "relu", "relu", "relu", "relu", "tanh"]
_KS = 3
_H0 = 64
_W0 = 64
_BATCH_BLOCK = 32          # samples per grid step (sublane batching); sweep 16..64.


def _round_up(x, m):
    return (x + m - 1) // m * m


def _build_plan(h0, w0):
    """Static per-layer geometry (python ints only; safe for the kernel closure)."""
    plan = []
    h, w, in_pad, row_off = h0, w0, w0 * _LAYER_CFG[0][0], 0
    for li, (ci, co, stride) in enumerate(_LAYER_CFG):
        oh = (h - _KS) // stride + 1
        ow = (w - _KS) // stride + 1
        out_pad = _round_up(ow * co, 128)      # lane-dense intermediate widths
        plan.append(dict(h=h, w=w, ci=ci, co=co, stride=stride, oh=oh, ow=ow,
                         in_pad=in_pad, out_pad=out_pad, rows=_KS * in_pad,
                         row_off=row_off, act=_LAYER_ACT[li]))
        row_off += _KS * in_pad
        h, w, in_pad = oh, ow, out_pad
    assert plan[-1]["oh"] == 1 and plan[-1]["ow"] == 1
    return plan


_PLAN = _build_plan(_H0, _W0)
_TAP_ROWS = sum(p["rows"] for p in _PLAN)        # 2880
_TAP_COLS = max(p["out_pad"] for p in _PLAN)     # 256
_EMB = _PLAN[-1]["out_pad"]                      # 128


def _fold_layer(wk, bk, p):
    """Fold conv weights + kw/column selection into one (3*in_pad, out_pad) tap.

    Activations are (H, B, W*CI) slabs with column index x*CI + ci.  For kernel
    row kh:  tap[kh*in_pad + x*CI + ci, ow*CO + co] = W[kh, x - stride*ow, ci, co]
    (zero when x - stride*ow is outside [0, 3)), so a single dot of the three
    row-shifted slabs (concatenated along K) applies the full conv row.
    """
    w, ci, co, stride, ow = p["w"], p["ci"], p["co"], p["stride"], p["ow"]
    in_pad, out_pad = p["in_pad"], p["out_pad"]
    col = jnp.arange(w)
    ocol = jnp.arange(ow)
    taps = []
    for kh in range(_KS):
        acc = jnp.zeros((w, ci, ow, co), jnp.float32)
        for kw in range(_KS):
            sel = (col[:, None] == (stride * ocol + kw)[None, :]).astype(jnp.float32)
            acc = acc + jnp.einsum("wo,ic->wioc", sel, wk[kh, kw])
        t = acc.reshape(w * ci, ow * co)
        taps.append(jnp.pad(t, ((0, in_pad - w * ci), (0, out_pad - ow * co))))
    tap = jnp.concatenate(taps, axis=0)                           # (3*in_pad, out_pad)
    bias = jnp.pad(jnp.tile(bk, ow), (0, out_pad - ow * co))[None, :]
    return tap, bias


def fold_params(params):
    """Fold all layers into two VMEM-resident constants (hoisted out of the jit)."""
    taps, biases = [], []
    for (wk, bk), p in zip(params, _PLAN):
        t, b = _fold_layer(wk, bk, p)
        taps.append(jnp.pad(t, ((0, 0), (0, _TAP_COLS - t.shape[1]))))
        biases.append(jnp.pad(b, ((0, 0), (0, _TAP_COLS - b.shape[1]))))
    taps_c = jnp.concatenate(taps, axis=0).astype(jnp.bfloat16)   # (2880, 256) bf16
    pad_rows = _round_up(len(biases), 8) - len(biases)
    bias_c = jnp.concatenate(
        biases + [jnp.zeros((pad_rows, _TAP_COLS), jnp.float32)], axis=0)  # (8, 256)
    return taps_c, bias_c


def _make_kernel(bblk):
    last = len(_PLAN) - 1

    def kernel(x_ref, taps_ref, bias_ref, o_ref):
        # Activations live as (H, bblk, W*C) values: the batch sits on the
        # sublane axis (bblk % 8 == 0), so every reshape below is
        # layout-preserving (no relayouts, no strided access).
        a = x_ref[...]                                            # (64, bblk, 64) f32
        for li, p in enumerate(_PLAN):
            h, oh, stride = p["h"], p["oh"], p["stride"]
            in_pad, out_pad = p["in_pad"], p["out_pad"]

            if stride == 2:
                # Even/odd row split via a layout-preserving reshape (replaces
                # the old one-hot selection matmuls).
                hp = h + (h % 2)
                if hp != h:
                    a = jnp.concatenate(
                        [a, jnp.zeros((hp - h, bblk, in_pad), a.dtype)], axis=0)
                ap = a.reshape(hp // 2, 2 * bblk, in_pad)
                even = ap[:, :bblk, :]       # original rows 0, 2, 4, ...
                odd = ap[:, bblk:, :]        # original rows 1, 3, 5, ...
                slabs = [even[0:oh], odd[0:oh], even[1:oh + 1]]
            else:
                slabs = [a[kh:kh + oh] for kh in range(_KS)]

            # Fuse the three kh taps into one MXU matmul with M = oh * bblk.
            x2 = jnp.concatenate(slabs, axis=-1)                  # (oh, bblk, 3*in_pad)
            x2 = x2.reshape(oh * bblk, _KS * in_pad).astype(jnp.bfloat16)
            tap = taps_ref[p["row_off"]:p["row_off"] + p["rows"], 0:out_pad]
            y = jnp.dot(x2, tap, preferred_element_type=jnp.float32)
            y = y + bias_ref[li:li + 1, 0:out_pad]
            y = jnp.maximum(y, 0.0) if p["act"] == "relu" else jnp.tanh(y)

            if li == last:
                o_ref[...] = y.astype(o_ref.dtype)                # oh == 1 -> (bblk, 128)
            else:
                a = y.reshape(oh, bblk, out_pad)

    return kernel


def _forward_batch(x_hnw, taps_c, bias_c):
    """x_hnw: (64, Ntot, 64) f32  ->  (Ntot, 128) embeddings."""
    h0, ntot, w0 = x_hnw.shape
    bblk = min(_BATCH_BLOCK, _round_up(ntot, 8))   # multiple of 8 (sublane aligned)
    nsteps = -(-ntot // bblk)
    npad = nsteps * bblk
    if npad != ntot:
        x_hnw = jnp.pad(x_hnw, ((0, 0), (0, npad - ntot), (0, 0)))

    out = pl.pallas_call(
        _make_kernel(bblk),
        out_shape=jax.ShapeDtypeStruct((npad, _EMB), jnp.float32),
        grid=(nsteps,),
        in_specs=[
            pl.BlockSpec((h0, bblk, w0), lambda i: (0, i, 0)),
            pl.BlockSpec(taps_c.shape, lambda i: (0, 0)),   # VMEM-resident constants
            pl.BlockSpec(bias_c.shape, lambda i: (0, 0)),
        ],
        out_specs=pl.BlockSpec((bblk, _EMB), lambda i: (i, 0)),
        compiler_params=pltpu.CompilerParams(
            dimension_semantics=("parallel",),               # shard batch over v7x TCs
            vmem_limit_bytes=32 * 1024 * 1024),
    )(x_hnw, taps_c, bias_c)
    return out[:ntot]


@jax.jit
def net2_forward(input1, input2, input3, taps_c, bias_c):
    """Triplet forward: one batched kernel launch shared by the three inputs."""
    n = input1.shape[0]
    x = jnp.concatenate([input1, input2, input3], axis=0)        # (3N, 1, 64, 64) NCHW
    x = x.reshape(x.shape[0], x.shape[2], x.shape[3])            # CI = 1: NCHW == NHWC
    x = jnp.transpose(x, (1, 0, 2)).astype(jnp.float32)          # (64, 3N, 64)
    emb = _forward_batch(x, taps_c, bias_c)
    return emb[:n], emb[n:2 * n], emb[2 * n:]


def init_params(key):
    """Deterministic Kaiming-uniform-style init matching nn.Conv2d shapes (HWIO)."""
    params = []
    for i, (ci, co, _stride) in enumerate(_LAYER_CFG):
        k_w, k_b = jax.random.split(jax.random.fold_in(key, i))
        fan_in = ci * _KS * _KS
        bound = 1.0 / (fan_in ** 0.5)
        wk = jax.random.uniform(k_w, (_KS, _KS, ci, co), jnp.float32, -bound, bound)
        bk = jax.random.uniform(k_b, (co,), jnp.float32, -bound, bound)
        params.append((wk, bk))
    return params


def _reference_forward(x_nchw, params):
    """Plain-JAX reference (in-script sanity check only)."""
    x = jnp.transpose(x_nchw, (0, 2, 3, 1))                      # NHWC
    for (wk, bk), (_ci, _co, stride), act in zip(params, _LAYER_CFG, _LAYER_ACT):
        x = jax.lax.conv_general_dilated(
            x, wk, window_strides=(stride, stride), padding="VALID",
            dimension_numbers=("NHWC", "HWIO", "NHWC"))
        x = x + bk[None, None, None, :]
        x = jnp.maximum(x, 0.0) if act == "relu" else jnp.tanh(x)
    return x.reshape(x.shape[0], -1)                             # (N,1,1,128) -> (N,128)


if __name__ == "__main__":
    key = jax.random.PRNGKey(0)
    k_p, k1, k2, k3 = jax.random.split(key, 4)
    params = init_params(k_p)
    taps_c, bias_c = fold_params(params)       # folded once, outside the jitted forward

    # 64x64 grayscale -> spatial 31 -> 15 -> 7 -> 5 -> 3 -> 1, embedding dim 128.
    batch = 2
    shape = (batch, 1, _H0, _W0)                # NCHW
    x1 = jax.random.normal(k1, shape, jnp.float32)
    x2 = jax.random.normal(k2, shape, jnp.float32)
    x3 = jax.random.normal(k3, shape, jnp.float32)

    o1, o2, o3 = net2_forward(x1, x2, x3, taps_c, bias_c)
    jax.block_until_ready((o1, o2, o3))
    assert o1.shape == (batch, 128) and o2.shape == (batch, 128) and o3.shape == (batch, 128)

    # Sanity check vs a plain-JAX conv reference.  Loose tolerance: taps and
    # activations go through the MXU in bf16 (same rounding as default f32 MXU
    # precision); a real tap/stride bug would show errors O(0.5).
    ref = jnp.concatenate([_reference_forward(x, params) for x in (x1, x2, x3)], axis=0)
    got = jnp.concatenate([o1, o2, o3], axis=0)
    max_err = float(jnp.max(jnp.abs(got - ref)))
    assert max_err < 5e-2, f"mismatch vs reference: {max_err}"

    print("KERNEL_OK")
</pallas_src>

<mosaic_0001>
module attributes {stable_mosaic.version = 11 : i64} {
  func.func @kernel(%arg0: i32, %arg1: memref<64x8x64xf32, #tpu.memory_space<vmem>>, %arg2: memref<2880x256xbf16, #tpu.memory_space<vmem>>, %arg3: memref<8x256xf32, #tpu.memory_space<vmem>>, %arg4: memref<8x128xf32, #tpu.memory_space<vmem>>) attributes {dimension_semantics = [#tpu.dimension_semantics<parallel>], iteration_bounds = array<i64: 1>, scalar_prefetch = 0 : i64, scratch_operands = 0 : i64, tpu.core_type = #tpu.core_type<tc>, window_params = [{transform_indices = @transform_0, window_bounds = array<i64: 64, 8, 64>}, {pipeline_mode = #tpu.pipeline_mode<synchronous>, transform_indices = @transform_1, window_bounds = array<i64: 2880, 256>}, {pipeline_mode = #tpu.pipeline_mode<synchronous>, transform_indices = @transform_2, window_bounds = array<i64: 8, 256>}, {transform_indices = @transform_3, window_bounds = array<i64: 8, 128>}]} {
    %c0 = arith.constant 0 : index
    %c0_0 = arith.constant 0 : index
    %c0_1 = arith.constant 0 : index
    %0 = vector.load %arg1[%c0, %c0_0, %c0_1] : memref<64x8x64xf32, #tpu.memory_space<vmem>>, vector<64x8x64xf32>
    %1 = vector.shape_cast %0 : vector<64x8x64xf32> to vector<32x16x64xf32>
    %2 = vector.extract_strided_slice %1 {offsets = [0, 0, 0], sizes = [32, 8, 64], strides = [1, 1, 1]} : vector<32x16x64xf32> to vector<32x8x64xf32>
    %3 = vector.extract_strided_slice %1 {offsets = [0, 8, 0], sizes = [32, 8, 64], strides = [1, 1, 1]} : vector<32x16x64xf32> to vector<32x8x64xf32>
    %4 = vector.extract_strided_slice %2 {offsets = [0, 0, 0], sizes = [31, 8, 64], strides = [1, 1, 1]} : vector<32x8x64xf32> to vector<31x8x64xf32>
    %5 = vector.extract_strided_slice %3 {offsets = [0, 0, 0], sizes = [31, 8, 64], strides = [1, 1, 1]} : vector<32x8x64xf32> to vector<31x8x64xf32>
    %6 = vector.extract_strided_slice %2 {offsets = [1, 0, 0], sizes = [31, 8, 64], strides = [1, 1, 1]} : vector<32x8x64xf32> to vector<31x8x64xf32>
    %7 = tpu.concatenate %4, %5, %6 in 2 : vector<31x8x64xf32>, vector<31x8x64xf32>, vector<31x8x64xf32> -> vector<31x8x192xf32>
    %8 = vector.shape_cast %7 : vector<31x8x192xf32> to vector<248x192xf32>
    %9 = arith.truncf %8 : vector<248x192xf32> to vector<248x192xbf16>
    %c0_2 = arith.constant 0 : index
    %c0_3 = arith.constant 0 : index
    %10 = vector.load %arg2[%c0_2, %c0_3] : memref<2880x256xbf16, #tpu.memory_space<vmem>>, vector<192x128xbf16>
    %cst = arith.constant dense<0.000000e+00> : vector<248x128xf32>
    %11 = tpu.matmul %9, %10, %cst {dimension_numbers = #tpu.dot_dimension_numbers<[1], [0], [0], [1], [0, 0, 1, 1], [], []>} : vector<248x192xbf16>, vector<192x128xbf16>, vector<248x128xf32> -> vector<248x128xf32>
    %c0_4 = arith.constant 0 : index
    %c0_5 = arith.constant 0 : index
    %12 = vector.load %arg3[%c0_4, %c0_5] : memref<8x256xf32, #tpu.memory_space<vmem>>, vector<1x128xf32>
    %13 = vector.broadcast %12 : vector<1x128xf32> to vector<248x128xf32>
    %14 = arith.addf %11, %13 : vector<248x128xf32>
    %cst_6 = arith.constant 0.000000e+00 : f32
    %15 = vector.broadcast %cst_6 : f32 to vector<248x128xf32>
    %16 = arith.maximumf %14, %15 : vector<248x128xf32>
    %17 = vector.shape_cast %16 : vector<248x128xf32> to vector<31x8x128xf32>
    %cst_7 = arith.constant 0.000000e+00 : f32
    %18 = vector.broadcast %cst_7 : f32 to vector<1x8x128xf32>
    %19 = tpu.concatenate %17, %18 in 0 : vector<31x8x128xf32>, vector<1x8x128xf32> -> vector<32x8x128xf32>
    %20 = vector.shape_cast %19 : vector<32x8x128xf32> to vector<16x16x128xf32>
    %21 = vector.extract_strided_slice %20 {offsets = [0, 0, 0], sizes = [16, 8, 128], strides = [1, 1, 1]} : vector<16x16x128xf32> to vector<16x8x128xf32>
    %22 = vector.extract_strided_slice %20 {offsets = [0, 8, 0], sizes = [16, 8, 128], strides = [1, 1, 1]} : vector<16x16x128xf32> to vector<16x8x128xf32>
    %23 = vector.extract_strided_slice %21 {offsets = [0, 0, 0], sizes = [15, 8, 128], strides = [1, 1, 1]} : vector<16x8x128xf32> to vector<15x8x128xf32>
    %24 = vector.extract_strided_slice %22 {offsets = [0, 0, 0], sizes = [15, 8, 128], strides = [1, 1, 1]} : vector<16x8x128xf32> to vector<15x8x128xf32>
    %25 = vector.extract_strided_slice %21 {offsets = [1, 0, 0], sizes = [15, 8, 128], strides = [1, 1, 1]} : vector<16x8x128xf32> to vector<15x8x128xf32>
    %26 = tpu.concatenate %23, %24, %25 in 2 : vector<15x8x128xf32>, vector<15x8x128xf32>, vector<15x8x128xf32> -> vector<15x8x384xf32>
    %27 = vector.shape_cast %26 : vector<15x8x384xf32> to vector<120x384xf32>
    %28 = arith.truncf %27 : vector<120x384xf32> to vector<120x384xbf16>
    %c192 = arith.constant 192 : index
    %c0_8 = arith.constant 0 : index
    %29 = vector.load %arg2[%c192, %c0_8] : memref<2880x256xbf16, #tpu.memory_space<vmem>>, vector<384x128xbf16>
    %cst_9 = arith.constant dense<0.000000e+00> : vector<120x128xf32>
    %30 = tpu.matmul %28, %29, %cst_9 {dimension_numbers = #tpu.dot_dimension_numbers<[1], [0], [0], [1], [0, 0, 1, 1], [], []>} : vector<120x384xbf16>, vector<384x128xbf16>, vector<120x128xf32> -> vector<120x128xf32>
    %c1 = arith.constant 1 : index
    %c0_10 = arith.constant 0 : index
    %31 = vector.load %arg3[%c1, %c0_10] : memref<8x256xf32, #tpu.memory_space<vmem>>, vector<1x128xf32>
    %32 = vector.broadcast %31 : vector<1x128xf32> to vector<120x128xf32>
    %33 = arith.addf %30, %32 : vector<120x128xf32>
    %cst_11 = arith.constant 0.000000e+00 : f32
    %34 = vector.broadcast %cst_11 : f32 to vector<120x128xf32>
    %35 = arith.maximumf %33, %34 : vector<120x128xf32>
    %36 = vector.shape_cast %35 : vector<120x128xf32> to vector<15x8x128xf32>
    %cst_12 = arith.constant 0.000000e+00 : f32
    %37 = vector.broadcast %cst_12 : f32 to vector<1x8x128xf32>
    %38 = tpu.concatenate %36, %37 in 0 : vector<15x8x128xf32>, vector<1x8x128xf32> -> vector<16x8x128xf32>
    %39 = vector.shape_cast %38 : vector<16x8x128xf32> to vector<8x16x128xf32>
    %40 = vector.extract_strided_slice %39 {offsets = [0, 0, 0], sizes = [8, 8, 128], strides = [1, 1, 1]} : vector<8x16x128xf32> to vector<8x8x128xf32>
    %41 = vector.extract_strided_slice %39 {offsets = [0, 8, 0], sizes = [8, 8, 128], strides = [1, 1, 1]} : vector<8x16x128xf32> to vector<8x8x128xf32>
    %42 = vector.extract_strided_slice %40 {offsets = [0, 0, 0], sizes = [7, 8, 128], strides = [1, 1, 1]} : vector<8x8x128xf32> to vector<7x8x128xf32>
    %43 = vector.extract_strided_slice %41 {offsets = [0, 0, 0], sizes = [7, 8, 128], strides = [1, 1, 1]} : vector<8x8x128xf32> to vector<7x8x128xf32>
    %44 = vector.extract_strided_slice %40 {offsets = [1, 0, 0], sizes = [7, 8, 128], strides = [1, 1, 1]} : vector<8x8x128xf32> to vector<7x8x128xf32>
    %45 = tpu.concatenate %42, %43, %44 in 2 : vector<7x8x128xf32>, vector<7x8x128xf32>, vector<7x8x128xf32> -> vector<7x8x384xf32>
    %46 = vector.shape_cast %45 : vector<7x8x384xf32> to vector<56x384xf32>
    %47 = arith.truncf %46 : vector<56x384xf32> to vector<56x384xbf16>
    %c576 = arith.constant 576 : index
    %c0_13 = arith.constant 0 : index
    %48 = vector.load %arg2[%c576, %c0_13] : memref<2880x256xbf16, #tpu.memory_space<vmem>>, vector<384x128xbf16>
    %cst_14 = arith.constant dense<0.000000e+00> : vector<56x128xf32>
    %49 = tpu.matmul %47, %48, %cst_14 {dimension_numbers = #tpu.dot_dimension_numbers<[1], [0], [0], [1], [0, 0, 1, 1], [], []>} : vector<56x384xbf16>, vector<384x128xbf16>, vector<56x128xf32> -> vector<56x128xf32>
    %c2 = arith.constant 2 : index
    %c0_15 = arith.constant 0 : index
    %50 = vector.load %arg3[%c2, %c0_15] : memref<8x256xf32, #tpu.memory_space<vmem>>, vector<1x128xf32>
    %51 = vector.broadcast %50 : vector<1x128xf32> to vector<56x128xf32>
    %52 = arith.addf %49, %51 : vector<56x128xf32>
    %cst_16 = arith.constant 0.000000e+00 : f32
    %53 = vector.broadcast %cst_16 : f32 to vector<56x128xf32>
    %54 = arith.maximumf %52, %53 : vector<56x128xf32>
    %55 = vector.shape_cast %54 : vector<56x128xf32> to vector<7x8x128xf32>
    %56 = vector.extract_strided_slice %55 {offsets = [0, 0, 0], sizes = [5, 8, 128], strides = [1, 1, 1]} : vector<7x8x128xf32> to vector<5x8x128xf32>
    %57 = vector.extract_strided_slice %55 {offsets = [1, 0, 0], sizes = [5, 8, 128], strides = [1, 1, 1]} : vector<7x8x128xf32> to vector<5x8x128xf32>
    %58 = vector.extract_strided_slice %55 {offsets = [2, 0, 0], sizes = [5, 8, 128], strides = [1, 1, 1]} : vector<7x8x128xf32> to vector<5x8x128xf32>
    %59 = tpu.concatenate %56, %57, %58 in 2 : vector<5x8x128xf32>, vector<5x8x128xf32>, vector<5x8x128xf32> -> vector<5x8x384xf32>
    %60 = vector.shape_cast %59 : vector<5x8x384xf32> to vector<40x384xf32>
    %61 = arith.truncf %60 : vector<40x384xf32> to vector<40x384xbf16>
    %c960 = arith.constant 960 : index
    %c0_17 = arith.constant 0 : index
    %62 = vector.load %arg2[%c960, %c0_17] : memref<2880x256xbf16, #tpu.memory_space<vmem>>, vector<384x256xbf16>
    %cst_18 = arith.constant dense<0.000000e+00> : vector<40x256xf32>
    %63 = tpu.matmul %61, %62, %cst_18 {dimension_numbers = #tpu.dot_dimension_numbers<[1], [0], [0], [1], [0, 0, 1, 1], [], []>} : vector<40x384xbf16>, vector<384x256xbf16>, vector<40x256xf32> -> vector<40x256xf32>
    %c3 = arith.constant 3 : index
    %c0_19 = arith.constant 0 : index
    %64 = vector.load %arg3[%c3, %c0_19] : memref<8x256xf32, #tpu.memory_space<vmem>>, vector<1x256xf32>
    %65 = vector.broadcast %64 : vector<1x256xf32> to vector<40x256xf32>
    %66 = arith.addf %63, %65 : vector<40x256xf32>
    %cst_20 = arith.constant 0.000000e+00 : f32
    %67 = vector.broadcast %cst_20 : f32 to vector<40x256xf32>
    %68 = arith.maximumf %66, %67 : vector<40x256xf32>
    %69 = vector.shape_cast %68 : vector<40x256xf32> to vector<5x8x256xf32>
    %70 = vector.extract_strided_slice %69 {offsets = [0, 0, 0], sizes = [3, 8, 256], strides = [1, 1, 1]} : vector<5x8x256xf32> to vector<3x8x256xf32>
    %71 = vector.extract_strided_slice %69 {offsets = [1, 0, 0], sizes = [3, 8, 256], strides = [1, 1, 1]} : vector<5x8x256xf32> to vector<3x8x256xf32>
    %72 = vector.extract_strided_slice %69 {offsets = [2, 0, 0], sizes = [3, 8, 256], strides = [1, 1, 1]} : vector<5x8x256xf32> to vector<3x8x256xf32>
    %73 = tpu.concatenate %70, %71, %72 in 2 : vector<3x8x256xf32>, vector<3x8x256xf32>, vector<3x8x256xf32> -> vector<3x8x768xf32>
    %74 = vector.shape_cast %73 : vector<3x8x768xf32> to vector<24x768xf32>
    %75 = arith.truncf %74 : vector<24x768xf32> to vector<24x768xbf16>
    %c1344 = arith.constant 1344 : index
    %c0_21 = arith.constant 0 : index
    %76 = vector.load %arg2[%c1344, %c0_21] : memref<2880x256xbf16, #tpu.memory_space<vmem>>, vector<768x256xbf16>
    %cst_22 = arith.constant dense<0.000000e+00> : vector<24x256xf32>
    %77 = tpu.matmul %75, %76, %cst_22 {dimension_numbers = #tpu.dot_dimension_numbers<[1], [0], [0], [1], [0, 0, 1, 1], [], []>} : vector<24x768xbf16>, vector<768x256xbf16>, vector<24x256xf32> -> vector<24x256xf32>
    %c4 = arith.constant 4 : index
    %c0_23 = arith.constant 0 : index
    %78 = vector.load %arg3[%c4, %c0_23] : memref<8x256xf32, #tpu.memory_space<vmem>>, vector<1x256xf32>
    %79 = vector.broadcast %78 : vector<1x256xf32> to vector<24x256xf32>
    %80 = arith.addf %77, %79 : vector<24x256xf32>
    %cst_24 = arith.constant 0.000000e+00 : f32
    %81 = vector.broadcast %cst_24 : f32 to vector<24x256xf32>
    %82 = arith.maximumf %80, %81 : vector<24x256xf32>
    %83 = vector.shape_cast %82 : vector<24x256xf32> to vector<3x8x256xf32>
    %84 = vector.extract_strided_slice %83 {offsets = [0, 0, 0], sizes = [1, 8, 256], strides = [1, 1, 1]} : vector<3x8x256xf32> to vector<1x8x256xf32>
    %85 = vector.extract_strided_slice %83 {offsets = [1, 0, 0], sizes = [1, 8, 256], strides = [1, 1, 1]} : vector<3x8x256xf32> to vector<1x8x256xf32>
    %86 = vector.extract_strided_slice %83 {offsets = [2, 0, 0], sizes = [1, 8, 256], strides = [1, 1, 1]} : vector<3x8x256xf32> to vector<1x8x256xf32>
    %87 = tpu.concatenate %84, %85, %86 in 2 : vector<1x8x256xf32>, vector<1x8x256xf32>, vector<1x8x256xf32> -> vector<1x8x768xf32>
    %88 = vector.shape_cast %87 : vector<1x8x768xf32> to vector<8x768xf32>
    %89 = arith.truncf %88 : vector<8x768xf32> to vector<8x768xbf16>
    %c2112 = arith.constant 2112 : index
    %c0_25 = arith.constant 0 : index
    %90 = vector.load %arg2[%c2112, %c0_25] : memref<2880x256xbf16, #tpu.memory_space<vmem>>, vector<768x128xbf16>
    %cst_26 = arith.constant dense<0.000000e+00> : vector<8x128xf32>
    %91 = tpu.matmul %89, %90, %cst_26 {dimension_numbers = #tpu.dot_dimension_numbers<[1], [0], [0], [1], [0, 0, 1, 1], [], []>} : vector<8x768xbf16>, vector<768x128xbf16>, vector<8x128xf32> -> vector<8x128xf32>
    %c5 = arith.constant 5 : index
    %c0_27 = arith.constant 0 : index
    %92 = vector.load %arg3[%c5, %c0_27] : memref<8x256xf32, #tpu.memory_space<vmem>>, vector<1x128xf32>
    %93 = vector.broadcast %92 : vector<1x128xf32> to vector<8x128xf32>
    %94 = arith.addf %91, %93 : vector<8x128xf32>
    %95 = math.tanh %94 : vector<8x128xf32>
    %c0_28 = arith.constant 0 : index
    %c0_29 = arith.constant 0 : index
    %96 = vector.load %arg4[%c0_28, %c0_29] : memref<8x128xf32, #tpu.memory_space<vmem>>, vector<8x128xf32>
    tpu.vector_store %arg4[%c0_28, %c0_29], %95 {strides = array<i32>} : memref<8x128xf32, #tpu.memory_space<vmem>>, vector<8x128xf32>,
    return
  }
  func.func @transform_0(%arg0: i32) -> (i32, i32, i32) {
    %c0_i32 = arith.constant 0 : i32
    %c0_i32_0 = arith.constant 0 : i32
    %c0_i32_1 = arith.constant 0 : i32
    return %c0_i32, %arg0, %c0_i32_0 : i32, i32, i32
  }
  func.func @transform_1(%arg0: i32) -> (i32, i32) {
    %c0_i32 = arith.constant 0 : i32
    %c0_i32_0 = arith.constant 0 : i32
    %c0_i32_1 = arith.constant 0 : i32
    return %c0_i32, %c0_i32_0 : i32, i32
  }
  func.func @transform_2(%arg0: i32) -> (i32, i32) {
    %c0_i32 = arith.constant 0 : i32
    %c0_i32_0 = arith.constant 0 : i32
    %c0_i32_1 = arith.constant 0 : i32
    return %c0_i32, %c0_i32_0 : i32, i32
  }
  func.func @transform_3(%arg0: i32) -> (i32, i32) {
    %c0_i32 = arith.constant 0 : i32
    %c0_i32_0 = arith.constant 0 : i32
    return %arg0, %c0_i32 : i32, i32
  }
}

</mosaic_0001>

<llo_original>
// kernel: net2_forward.1
$region0: #{net2_forward.1}
  #allocation0 [shape = 'u32[]', space=smem, size = 0x4, offset = 0x4, fixed_abs, tag = 'smem constant byte address 0x4 - core index']
  #allocation1 [shape = 'u32[72,128]{1,0:T(1,128)}', space=vmem, size = 0x9000, scoped, tag = 'internal scratch']
  %s0 = inlined_call_operand.vmem [shape: f32[64,8,64], index: 0, kind: input, shape index: {}]
  %s1 = inlined_call_operand.hbm [shape: bf16[2880,256], index: 1, kind: input, shape index: {}]
  %s2 = inlined_call_operand.hbm [shape: f32[8,256], index: 2, kind: input, shape index: {}]
  %s3 = inlined_call_operand.vmem [shape: f32[8,128], index: 3, kind: output, shape index: {}]
  %s4 = sld [smem:[#allocation0]]
  $region30: #{net2_forward.1} parent=0
    _
  %s6 = ssub.s32 1, %s4
  %s7 = scalar_select 0, %s6, %s4
  $region1: #{net2_forward.1} parent=0
    #allocation2 [shape = 'u8[1474560]{0}', space=vmem, size = 0x168000, scoped, tag = 'input window, operand 1, single buffered']
    #allocation3 [shape = 's32[1]{0}', space=sflag, size = 0x4, scoped, tag = 'scoped memory for net2_forward.1']
    #allocation4 [shape = 'u8[8192]{0}', space=vmem, size = 0x2000, scoped, tag = 'input window, operand 2, single buffered']
    #allocation5 [shape = 's32[1]{0}', space=sflag, size = 0x4, scoped, tag = 'scoped memory for net2_forward.1']
    %8 = vsyncpa [#allocation3], 0
    %9 = vsyncpa [#allocation5], 0
    // Predicated region
    $region2: #{net2_forward.1} parent=1 // pred_check
      _
    $region3: #{net2_forward.1} parent=1 // pred_check_branch
      %11 = sbr.rel (0) target = $region5
    $region4: #{net2_forward.1} parent=1 // pred_region
      _
    $region5: #{net2_forward.1} parent=1 // pred_fallthru
      _
    // Predicated region
    $region6: #{net2_forward.1} parent=1 // pred_check
      _
    $region7: #{net2_forward.1} parent=1 // pred_check_branch
      %13 = sbr.rel (0) target = $region9
    $region8: #{net2_forward.1} parent=1 // pred_region
      %15 = vsyncadd [#allocation3], 0
      %s16 = sshll.u32 %s1, 4
      %s17 = int_to_ptr.hbm [resolvable:$true] %s16
      %s18 = sshll.u32 [#allocation2], 4
      %s19 = int_to_ptr.vmem [resolvable:$true] %s18
      %24 = dma.hbm_to_vmem [thread:$0]  %s17, 46080, %s19, [#allocation3], 128, 128, 8
    $region9: #{net2_forward.1} parent=1 // pred_fallthru
      _
    // Predicated region
    $region10: #{net2_forward.1} parent=1 // pred_check
      _
    $region11: #{net2_forward.1} parent=1 // pred_check_branch
      %26 = sbr.rel (0) target = $region13
    $region12: #{net2_forward.1} parent=1 // pred_region
      %28 = vsyncadd [#allocation5], 0
      %s30 = sshll.u32 %s2, 4
      %s31 = int_to_ptr.hbm [resolvable:$true] %s30
      %s32 = sshll.u32 [#allocation4], 4
      %s33 = int_to_ptr.vmem [resolvable:$true] %s32
      %35 = dma.hbm_to_vmem [thread:$0]  %s31, 256, %s33, [#allocation5]
    $region13: #{net2_forward.1} parent=1 // pred_fallthru
      _
    // Predicated region
    $region14: #{net2_forward.1} parent=1 // pred_check
      _
    $region15: #{net2_forward.1} parent=1 // pred_check_branch
      %37 = sbr.rel (0) target = $region17
    $region16: #{net2_forward.1} parent=1 // pred_region
      %39 = dma.done [#allocation3], 46080
    $region17: #{net2_forward.1} parent=1 // pred_fallthru
      _
    // Predicated region
    $region18: #{net2_forward.1} parent=1 // pred_check
      _
    $region19: #{net2_forward.1} parent=1 // pred_check_branch
      %41 = sbr.rel (0) target = $region21
    $region20: #{net2_forward.1} parent=1 // pred_region
      %43 = dma.done [#allocation5], 256
    $region21: #{net2_forward.1} parent=1 // pred_fallthru
      _
    %v45 = vld [vmem:[%s0] sm:$0xff]
    %v46 = vld [vmem:[%s0 + $0x8] sm:$0xff]
    %v47 = vld [vmem:[%s0 + $0x10] sm:$0xff]
    %v48 = vld [vmem:[%s0 + $0x18] sm:$0xff]
    %v49 = vld [vmem:[%s0 + $0x20] sm:$0xff]
    %v50 = vld [vmem:[%s0 + $0x28] sm:$0xff]
    %v51 = vld [vmem:[%s0 + $0x30] sm:$0xff]
    %v52 = vld [vmem:[%s0 + $0x38] sm:$0xff]
    %v53 = vld [vmem:[%s0 + $0x40] sm:$0xff]
    %v54 = vld [vmem:[%s0 + $0x48] sm:$0xff]
    %v55 = vld [vmem:[%s0 + $0x50] sm:$0xff]
    %v56 = vld [vmem:[%s0 + $0x58] sm:$0xff]
    %v57 = vld [vmem:[%s0 + $0x60] sm:$0xff]
    %v58 = vld [vmem:[%s0 + $0x68] sm:$0xff]
    %v59 = vld [vmem:[%s0 + $0x70] sm:$0xff]
    %v60 = vld [vmem:[%s0 + $0x78] sm:$0xff]
    %v61 = vld [vmem:[%s0 + $0x80] sm:$0xff]
    %v62 = vld [vmem:[%s0 + $0x88] sm:$0xff]
    %v63 = vld [vmem:[%s0 + $0x90] sm:$0xff]
    %v64 = vld [vmem:[%s0 + $0x98] sm:$0xff]
    %v65 = vld [vmem:[%s0 + $0xa0] sm:$0xff]
    %v66 = vld [vmem:[%s0 + $0xa8] sm:$0xff]
    %v67 = vld [vmem:[%s0 + $0xb0] sm:$0xff]
    %v68 = vld [vmem:[%s0 + $0xb8] sm:$0xff]
    %v69 = vld [vmem:[%s0 + $0xc0] sm:$0xff]
    %v70 = vld [vmem:[%s0 + $0xc8] sm:$0xff]
    %v71 = vld [vmem:[%s0 + $0xd0] sm:$0xff]
    %v72 = vld [vmem:[%s0 + $0xd8] sm:$0xff]
    %v73 = vld [vmem:[%s0 + $0xe0] sm:$0xff]
    %v74 = vld [vmem:[%s0 + $0xe8] sm:$0xff]
    %v75 = vld [vmem:[%s0 + $0xf0] sm:$0xff]
    %v76 = vld [vmem:[%s0 + $0xf8] sm:$0xff]
    %v77 = vld [vmem:[%s0 + $0x100] sm:$0xff]
    %v78 = vld [vmem:[%s0 + $0x108] sm:$0xff]
    %v79 = vld [vmem:[%s0 + $0x110] sm:$0xff]
    %v80 = vld [vmem:[%s0 + $0x118] sm:$0xff]
    %v81 = vld [vmem:[%s0 + $0x120] sm:$0xff]
    %v82 = vld [vmem:[%s0 + $0x128] sm:$0xff]
    %v83 = vld [vmem:[%s0 + $0x130] sm:$0xff]
    %v84 = vld [vmem:[%s0 + $0x138] sm:$0xff]
    %v85 = vld [vmem:[%s0 + $0x140] sm:$0xff]
    %v86 = vld [vmem:[%s0 + $0x148] sm:$0xff]
    %v87 = vld [vmem:[%s0 + $0x150] sm:$0xff]
    %v88 = vld [vmem:[%s0 + $0x158] sm:$0xff]
    %v89 = vld [vmem:[%s0 + $0x160] sm:$0xff]
    %v90 = vld [vmem:[%s0 + $0x168] sm:$0xff]
    %v91 = vld [vmem:[%s0 + $0x170] sm:$0xff]
    %v92 = vld [vmem:[%s0 + $0x178] sm:$0xff]
    %v93 = vld [vmem:[%s0 + $0x180] sm:$0xff]
    %v94 = vld [vmem:[%s0 + $0x188] sm:$0xff]
    %v95 = vld [vmem:[%s0 + $0x190] sm:$0xff]
    %v96 = vld [vmem:[%s0 + $0x198] sm:$0xff]
    %v97 = vld [vmem:[%s0 + $0x1a0] sm:$0xff]
    %v98 = vld [vmem:[%s0 + $0x1a8] sm:$0xff]
    %v99 = vld [vmem:[%s0 + $0x1b0] sm:$0xff]
    %v100 = vld [vmem:[%s0 + $0x1b8] sm:$0xff]
    %v101 = vld [vmem:[%s0 + $0x1c0] sm:$0xff]
    %v102 = vld [vmem:[%s0 + $0x1c8] sm:$0xff]
    %v103 = vld [vmem:[%s0 + $0x1d0] sm:$0xff]
    %v104 = vld [vmem:[%s0 + $0x1d8] sm:$0xff]
    %v105 = vld [vmem:[%s0 + $0x1e0] sm:$0xff]
    %v106 = vld [vmem:[%s0 + $0x1e8] sm:$0xff]
    %v107 = vld [vmem:[%s0 + $0x1f0] sm:$0xff]
    %139 = vrot.lane.b32.xlu0 %v46, 64
    %v140 = vpop.permute.xlu0 %139
    %141 = vrot.lane.b32.xlu0 %v48, 64
    %v142 = vpop.permute.xlu0 %141
    %143 = vrot.lane.b32.xlu0 %v50, 64
    %v144 = vpop.permute.xlu0 %143
    %145 = vrot.lane.b32.xlu0 %v52, 64
    %v146 = vpop.permute.xlu0 %145
    %147 = vrot.lane.b32.xlu0 %v54, 64
    %v148 = vpop.permute.xlu0 %147
    %149 = vrot.lane.b32.xlu0 %v56, 64
    %v150 = vpop.permute.xlu0 %149
    %151 = vrot.lane.b32.xlu0 %v58, 64
    %v152 = vpop.permute.xlu0 %151
    %153 = vrot.lane.b32.xlu0 %v60, 64
    %v154 = vpop.permute.xlu0 %153
    %155 = vrot.lane.b32.xlu0 %v62, 64
    %v156 = vpop.permute.xlu0 %155
    %157 = vrot.lane.b32.xlu0 %v64, 64
    %v158 = vpop.permute.xlu0 %157
    %159 = vrot.lane.b32.xlu0 %v66, 64
    %v160 = vpop.permute.xlu0 %159
    %161 = vrot.lane.b32.xlu0 %v68, 64
    %v162 = vpop.permute.xlu0 %161
    %163 = vrot.lane.b32.xlu0 %v70, 64
    %v164 = vpop.permute.xlu0 %163
    %165 = vrot.lane.b32.xlu0 %v72, 64
    %v166 = vpop.permute.xlu0 %165
    %167 = vrot.lane.b32.xlu0 %v74, 64
    %v168 = vpop.permute.xlu0 %167
    %169 = vrot.lane.b32.xlu0 %v76, 64
    %v170 = vpop.permute.xlu0 %169
    %171 = vrot.lane.b32.xlu0 %v78, 64
    %v172 = vpop.permute.xlu0 %171
    %173 = vrot.lane.b32.xlu0 %v80, 64
    %v174 = vpop.permute.xlu0 %173
    %175 = vrot.lane.b32.xlu0 %v82, 64
    %v176 = vpop.permute.xlu0 %175
    %177 = vrot.lane.b32.xlu0 %v84, 64
    %v178 = vpop.permute.xlu0 %177
    %179 = vrot.lane.b32.xlu0 %v86, 64
    %v180 = vpop.permute.xlu0 %179
    %181 = vrot.lane.b32.xlu0 %v88, 64
    %v182 = vpop.permute.xlu0 %181
    %183 = vrot.lane.b32.xlu0 %v90, 64
    %v184 = vpop.permute.xlu0 %183
    %185 = vrot.lane.b32.xlu0 %v92, 64
    %v186 = vpop.permute.xlu0 %185
    %187 = vrot.lane.b32.xlu0 %v94, 64
    %v188 = vpop.permute.xlu0 %187
    %189 = vrot.lane.b32.xlu0 %v96, 64
    %v190 = vpop.permute.xlu0 %189
    %191 = vrot.lane.b32.xlu0 %v98, 64
    %v192 = vpop.permute.xlu0 %191
    %193 = vrot.lane.b32.xlu0 %v100, 64
    %v194 = vpop.permute.xlu0 %193
    %195 = vrot.lane.b32.xlu0 %v102, 64
    %v196 = vpop.permute.xlu0 %195
    %197 = vrot.lane.b32.xlu0 %v104, 64
    %v198 = vpop.permute.xlu0 %197
    %199 = vrot.lane.b32.xlu0 %v106, 64
    %v200 = vpop.permute.xlu0 %199
    %vm232 = vcmask 523264
    %v233 = vsel %vm232, %v45, %v140
    %v234 = vsel %vm232, %v47, %v142
    %v235 = vsel %vm232, %v49, %v144
    %v236 = vsel %vm232, %v51, %v146
    %v237 = vsel %vm232, %v53, %v148
    %v238 = vsel %vm232, %v55, %v150
    %v239 = vsel %vm232, %v57, %v152
    %v240 = vsel %vm232, %v59, %v154
    %v241 = vsel %vm232, %v61, %v156
    %v242 = vsel %vm232, %v63, %v158
    %v243 = vsel %vm232, %v65, %v160
    %v244 = vsel %vm232, %v67, %v162
    %v245 = vsel %vm232, %v69, %v164
    %v246 = vsel %vm232, %v71, %v166
    %v247 = vsel %vm232, %v73, %v168
    %v248 = vsel %vm232, %v75, %v170
    %v249 = vsel %vm232, %v77, %v172
    %v250 = vsel %vm232, %v79, %v174
    %v251 = vsel %vm232, %v81, %v176
    %v252 = vsel %vm232, %v83, %v178
    %v253 = vsel %vm232, %v85, %v180
    %v254 = vsel %vm232, %v87, %v182
    %v255 = vsel %vm232, %v89, %v184
    %v256 = vsel %vm232, %v91, %v186
    %v257 = vsel %vm232, %v93, %v188
    %v258 = vsel %vm232, %v95, %v190
    %v259 = vsel %vm232, %v97, %v192
    %v260 = vsel %vm232, %v99, %v194
    %v261 = vsel %vm232, %v101, %v196
    %v262 = vsel %vm232, %v103, %v198
    %v263 = vsel %vm232, %v105, %v200
    %v264 = vpack.c.bf16 %v234, %v233
    %v265 = vpack.c.bf16 %v49, %v47
    %v266 = vpack.c.bf16 %v236, %v235
    %v267 = vpack.c.bf16 %v53, %v51
    %v268 = vpack.c.bf16 %v238, %v237
    %v269 = vpack.c.bf16 %v57, %v55
    %v270 = vpack.c.bf16 %v240, %v239
    %v271 = vpack.c.bf16 %v61, %v59
    %v272 = vpack.c.bf16 %v242, %v241
    %v273 = vpack.c.bf16 %v65, %v63
    %v274 = vpack.c.bf16 %v244, %v243
    %v275 = vpack.c.bf16 %v69, %v67
    %v276 = vpack.c.bf16 %v246, %v245
    %v277 = vpack.c.bf16 %v73, %v71
    %v278 = vpack.c.bf16 %v248, %v247
    %v279 = vpack.c.bf16 %v77, %v75
    %v280 = vpack.c.bf16 %v250, %v249
    %v281 = vpack.c.bf16 %v81, %v79
    %v282 = vpack.c.bf16 %v252, %v251
    %v283 = vpack.c.bf16 %v85, %v83
    %v284 = vpack.c.bf16 %v254, %v253
    %v285 = vpack.c.bf16 %v89, %v87
    %v286 = vpack.c.bf16 %v256, %v255
    %v287 = vpack.c.bf16 %v93, %v91
    %v288 = vpack.c.bf16 %v258, %v257
    %v289 = vpack.c.bf16 %v97, %v95
    %v290 = vpack.c.bf16 %v260, %v259
    %v291 = vpack.c.bf16 %v101, %v99
    %v292 = vpack.c.bf16 %v262, %v261
    %v293 = vpack.c.bf16 %v105, %v103
    %v294 = vpack.c.bf16 %v263, %v263
    %v295 = vpack.c.bf16 %v107, %v107
    %v296 = vld [vmem:[#allocation2] sm:$0xf]
    %v297 = vld [vmem:[#allocation2 + $0x8] sm:$0xf]
    %v298 = vld [vmem:[#allocation2 + $0x10] sm:$0xf]
    %v299 = vld [vmem:[#allocation2 + $0x18] sm:$0xf]
    %v300 = vld [vmem:[#allocation2 + $0x20] sm:$0xf]
    %v301 = vld [vmem:[#allocation2 + $0x28] sm:$0xf]
    %v302 = vld [vmem:[#allocation2 + $0x30] sm:$0xf]
    %v303 = vld [vmem:[#allocation2 + $0x38] sm:$0xf]
    %v304 = vld [vmem:[#allocation2 + $0x40] sm:$0xf]
    %v305 = vld [vmem:[#allocation2 + $0x48] sm:$0xf]
    %v306 = vld [vmem:[#allocation2 + $0x50] sm:$0xf]
    %v307 = vld [vmem:[#allocation2 + $0x58] sm:$0xf]
    %v308 = vld [vmem:[#allocation2 + $0x60] sm:$0xf]
    %v309 = vld [vmem:[#allocation2 + $0x68] sm:$0xf]
    %v310 = vld [vmem:[#allocation2 + $0x70] sm:$0xf]
    %v311 = vld [vmem:[#allocation2 + $0x78] sm:$0xf]
    %v312 = vld [vmem:[#allocation2 + $0x80] sm:$0xf]
    %v313 = vld [vmem:[#allocation2 + $0x88] sm:$0xf]
    %v314 = vld [vmem:[#allocation2 + $0x90] sm:$0xf]
    %v315 = vld [vmem:[#allocation2 + $0x98] sm:$0xf]
    %v316 = vld [vmem:[#allocation2 + $0xa0] sm:$0xf]
    %v317 = vld [vmem:[#allocation2 + $0xa8] sm:$0xf]
    %v318 = vld [vmem:[#allocation2 + $0xb0] sm:$0xf]
    %v319 = vld [vmem:[#allocation2 + $0xb8] sm:$0xf]
    %v320 = vld [vmem:[#allocation4] ss:$0 sm:$0xff]
    %v345 = vunpack.c.l.b16 %v296
    %v346 = vunpack.c.l.b16 %v297
    %v347 = vunpack.c.l.b16 %v298
    %v348 = vunpack.c.l.b16 %v299
    %v349 = vunpack.c.l.b16 %v300
    %v350 = vunpack.c.l.b16 %v301
    %v351 = vunpack.c.l.b16 %v302
    %v352 = vunpack.c.l.b16 %v303
    %v353 = vunpack.c.l.b16 %v304
    %v354 = vunpack.c.l.b16 %v305
    %v355 = vunpack.c.l.b16 %v306
    %v356 = vunpack.c.l.b16 %v307
    %v357 = vunpack.c.l.b16 %v308
    %v358 = vunpack.c.l.b16 %v309
    %v359 = vunpack.c.l.b16 %v310
    %v360 = vunpack.c.l.b16 %v311
    %v361 = vunpack.c.l.b16 %v312
    %v362 = vunpack.c.l.b16 %v313
    %v363 = vunpack.c.l.b16 %v314
    %v364 = vunpack.c.l.b16 %v315
    %v365 = vunpack.c.l.b16 %v316
    %v366 = vunpack.c.l.b16 %v317
    %v367 = vunpack.c.l.b16 %v318
    %v368 = vunpack.c.l.b16 %v319
    %v369 = vpack.c.b16 %v346, %v345
    %v370 = vpack.c.b16 %v348, %v347
    %v371 = vpack.c.b16 %v350, %v349
    %v372 = vpack.c.b16 %v352, %v351
    %v373 = vpack.c.b16 %v354, %v353
    %v374 = vpack.c.b16 %v356, %v355
    %v375 = vpack.c.b16 %v358, %v357
    %v376 = vpack.c.b16 %v360, %v359
    %v377 = vpack.c.b16 %v362, %v361
    %v378 = vpack.c.b16 %v364, %v363
    %v379 = vpack.c.b16 %v366, %v365
    %v380 = vpack.c.b16 %v368, %v367
    %v394 = vsel %vm232, %v265, 0
    %v397 = vsel %vm232, %v267, 0
    %v400 = vsel %vm232, %v269, 0
    %v403 = vsel %vm232, %v271, 0
    %v406 = vsel %vm232, %v273, 0
    %v409 = vsel %vm232, %v275, 0
    %v412 = vsel %vm232, %v277, 0
    %v415 = vsel %vm232, %v279, 0
    %v418 = vsel %vm232, %v281, 0
    %v421 = vsel %vm232, %v283, 0
    %v424 = vsel %vm232, %v285, 0
    %v427 = vsel %vm232, %v287, 0
    %v430 = vsel %vm232, %v289, 0
    %v433 = vsel %vm232, %v291, 0
    %v436 = vsel %vm232, %v293, 0
    %v439 = vsel %vm232, %v295, 0
    %441 = vmatpush.bf16.msra.mxu0 %v376
    %442 = vmatpush.bf16.msra.mxu0 %v375
    %443 = vmatpush.bf16.msra.mxu0 %v374
    %444 = vmatpush.bf16.msra.mxu0 %v373
    %445 = vmatpush.bf16.msra.mxu0 %v372
    %446 = vmatpush.bf16.msra.mxu0 %v371
    %447 = vmatpush.bf16.msra.mxu0 %v370
    %448 = vmatpush.bf16.msra.mxu0 %v369
    %449 = vmatmul.bf16.gmra.mxu0 %v264
    %v450 = vpop.f32.mrf.mxu0
    %v451 = vadd.f32 %v320, %v450
    %v452 = vpop.f32.mrf.mxu0
    %v453 = vadd.f32 %v320, %v452
    %454 = vmatmul.bf16.gmra.mxu0 %v266
    %v455 = vpop.f32.mrf.mxu0
    %v456 = vadd.f32 %v320, %v455
    %v457 = vpop.f32.mrf.mxu0
    %v458 = vadd.f32 %v320, %v457
    %459 = vmatmul.bf16.gmra.mxu0 %v268
    %v460 = vpop.f32.mrf.mxu0
    %v461 = vadd.f32 %v320, %v460
    %v462 = vpop.f32.mrf.mxu0
    %v463 = vadd.f32 %v320, %v462
    %464 = vmatmul.bf16.gmra.mxu0 %v270
    %v465 = vpop.f32.mrf.mxu0
    %v466 = vadd.f32 %v320, %v465
    %v467 = vpop.f32.mrf.mxu0
    %v468 = vadd.f32 %v320, %v467
    %469 = vmatmul.bf16.gmra.mxu0 %v272
    %v470 = vpop.f32.mrf.mxu0
    %v471 = vadd.f32 %v320, %v470
    %v472 = vpop.f32.mrf.mxu0
    %v473 = vadd.f32 %v320, %v472
    %474 = vmatmul.bf16.gmra.mxu0 %v274
    %v475 = vpop.f32.mrf.mxu0
    %v476 = vadd.f32 %v320, %v475
    %v477 = vpop.f32.mrf.mxu0
    %v478 = vadd.f32 %v320, %v477
    %479 = vmatmul.bf16.gmra.mxu0 %v276
    %v480 = vpop.f32.mrf.mxu0
    %v481 = vadd.f32 %v320, %v480
    %v482 = vpop.f32.mrf.mxu0
    %v483 = vadd.f32 %v320, %v482
    %484 = vmatmul.bf16.gmra.mxu0 %v278
    %v485 = vpop.f32.mrf.mxu0
    %v486 = vadd.f32 %v320, %v485
    %v487 = vpop.f32.mrf.mxu0
    %v488 = vadd.f32 %v320, %v487
    %489 = vmatmul.bf16.gmra.mxu0 %v280
    %v490 = vpop.f32.mrf.mxu0
    %v491 = vadd.f32 %v320, %v490
    %v492 = vpop.f32.mrf.mxu0
    %v493 = vadd.f32 %v320, %v492
    %494 = vmatmul.bf16.gmra.mxu0 %v282
    %v495 = vpop.f32.mrf.mxu0
    %v496 = vadd.f32 %v320, %v495
    %v497 = vpop.f32.mrf.mxu0
    %v498 = vadd.f32 %v320, %v497
    %499 = vmatmul.bf16.gmra.mxu0 %v284
    %v500 = vpop.f32.mrf.mxu0
    %v501 = vadd.f32 %v320, %v500
    %v502 = vpop.f32.mrf.mxu0
    %v503 = vadd.f32 %v320, %v502
    %504 = vmatmul.bf16.gmra.mxu0 %v286
    %v505 = vpop.f32.mrf.mxu0
    %v506 = vadd.f32 %v320, %v505
    %v507 = vpop.f32.mrf.mxu0
    %v508 = vadd.f32 %v320, %v507
    %509 = vmatmul.bf16.gmra.mxu0 %v288
    %v510 = vpop.f32.mrf.mxu0
    %v511 = vadd.f32 %v320, %v510
    %v512 = vpop.f32.mrf.mxu0
    %v513 = vadd.f32 %v320, %v512
    %514 = vmatmul.bf16.gmra.mxu0 %v290
    %v515 = vpop.f32.mrf.mxu0
    %v516 = vadd.f32 %v320, %v515
    %v517 = vpop.f32.mrf.mxu0
    %v518 = vadd.f32 %v320, %v517
    %519 = vmatmul.bf16.gmra.mxu0 %v292
    %v520 = vpop.f32.mrf.mxu0
    %v521 = vadd.f32 %v320, %v520
    %v522 = vpop.f32.mrf.mxu0
    %v523 = vadd.f32 %v320, %v522
    %524 = vmatmul.bf16.gmra.mxu0 %v294
    %v525 = vpop.f32.mrf.mxu0
    %v526 = vadd.f32 %v320, %v525
    %v527 = vpop.f32.mrf.mxu0
    %528 = vdwg.mxu0
    %529 = vmatpush.bf16.msra.mxu0 0
    %530 = vmatpush.bf16.msra.mxu0 0
    %531 = vmatpush.bf16.msra.mxu0 0
    %532 = vmatpush.bf16.msra.mxu0 0
    %533 = vmatpush.bf16.msra.mxu0 %v380
    %534 = vmatpush.bf16.msra.mxu0 %v379
    %535 = vmatpush.bf16.msra.mxu0 %v378
    %536 = vmatpush.bf16.msra.mxu0 %v377
    %537 = vmatmul.bf16.gmra.mxu0 %v394
    %v538 = vpop.f32.mrf.mxu0
    %v539 = vadd.f32 %v451, %v538
    %v540 = vpop.f32.mrf.mxu0
    %v541 = vadd.f32 %v453, %v540
    %542 = vmatmul.bf16.gmra.mxu0 %v397
    %v543 = vpop.f32.mrf.mxu0
    %v544 = vadd.f32 %v456, %v543
    %v545 = vpop.f32.mrf.mxu0
    %v546 = vadd.f32 %v458, %v545
    %547 = vmatmul.bf16.gmra.mxu0 %v400
    %v548 = vpop.f32.mrf.mxu0
    %v549 = vadd.f32 %v461, %v548
    %v550 = vpop.f32.mrf.mxu0
    %v551 = vadd.f32 %v463, %v550
    %552 = vmatmul.bf16.gmra.mxu0 %v403
    %v553 = vpop.f32.mrf.mxu0
    %v554 = vadd.f32 %v466, %v553
    %v555 = vpop.f32.mrf.mxu0
    %v556 = vadd.f32 %v468, %v555
    %557 = vmatmul.bf16.gmra.mxu0 %v406
    %v558 = vpop.f32.mrf.mxu0
    %v559 = vadd.f32 %v471, %v558
    %v560 = vpop.f32.mrf.mxu0
    %v561 = vadd.f32 %v473, %v560
    %562 = vmatmul.bf16.gmra.mxu0 %v409
    %v563 = vpop.f32.mrf.mxu0
    %v564 = vadd.f32 %v476, %v563
    %v565 = vpop.f32.mrf.mxu0
    %v566 = vadd.f32 %v478, %v565
    %567 = vmatmul.bf16.gmra.mxu0 %v412
    %v568 = vpop.f32.mrf.mxu0
    %v569 = vadd.f32 %v481, %v568
    %v570 = vpop.f32.mrf.mxu0
    %v571 = vadd.f32 %v483, %v570
    %572 = vmatmul.bf16.gmra.mxu0 %v415
    %v573 = vpop.f32.mrf.mxu0
    %v574 = vadd.f32 %v486, %v573
    %v575 = vpop.f32.mrf.mxu0
    %v576 = vadd.f32 %v488, %v575
    %577 = vmatmul.bf16.gmra.mxu0 %v418
    %v578 = vpop.f32.mrf.mxu0
    %v579 = vadd.f32 %v491, %v578
    %v580 = vpop.f32.mrf.mxu0
    %v581 = vadd.f32 %v493, %v580
    %582 = vmatmul.bf16.gmra.mxu0 %v421
    %v583 = vpop.f32.mrf.mxu0
    %v584 = vadd.f32 %v496, %v583
    %v585 = vpop.f32.mrf.mxu0
    %v586 = vadd.f32 %v498, %v585
    %587 = vmatmul.bf16.gmra.mxu0 %v424
    %v588 = vpop.f32.mrf.mxu0
    %v589 = vadd.f32 %v501, %v588
    %v590 = vpop.f32.mrf.mxu0
    %v591 = vadd.f32 %v503, %v590
    %592 = vmatmul.bf16.gmra.mxu0 %v427
    %v593 = vpop.f32.mrf.mxu0
    %v594 = vadd.f32 %v506, %v593
    %v595 = vpop.f32.mrf.mxu0
    %v596 = vadd.f32 %v508, %v595
    %597 = vmatmul.bf16.gmra.mxu0 %v430
    %v598 = vpop.f32.mrf.mxu0
    %v599 = vadd.f32 %v511, %v598
    %v600 = vpop.f32.mrf.mxu0
    %v601 = vadd.f32 %v513, %v600
    %602 = vmatmul.bf16.gmra.mxu0 %v433
    %v603 = vpop.f32.mrf.mxu0
    %v604 = vadd.f32 %v516, %v603
    %v605 = vpop.f32.mrf.mxu0
    %v606 = vadd.f32 %v518, %v605
    %607 = vmatmul.bf16.gmra.mxu0 %v436
    %v608 = vpop.f32.mrf.mxu0
    %v609 = vadd.f32 %v521, %v608
    %v610 = vpop.f32.mrf.mxu0
    %v611 = vadd.f32 %v523, %v610
    %612 = vmatmul.bf16.gmra.mxu0 %v439
    %v613 = vpop.f32.mrf.mxu0
    %v614 = vadd.f32 %v526, %v613
    %v615 = vpop.f32.mrf.mxu0
    %616 = vdwg.mxu0
    %v617 = vmax.f32 %v539, 0.0
    %v618 = vmax.f32 %v541, 0.0
    %v619 = vmax.f32 %v544, 0.0
    %v620 = vmax.f32 %v546, 0.0
    %v621 = vmax.f32 %v549, 0.0
    %v622 = vmax.f32 %v551, 0.0
    %v623 = vmax.f32 %v554, 0.0
    %v624 = vmax.f32 %v556, 0.0
    %v625 = vmax.f32 %v559, 0.0
    %v626 = vmax.f32 %v561, 0.0
    %v627 = vmax.f32 %v564, 0.0
    %v628 = vmax.f32 %v566, 0.0
    %v629 = vmax.f32 %v569, 0.0
    %v630 = vmax.f32 %v571, 0.0
    %v631 = vmax.f32 %v574, 0.0
    %v632 = vmax.f32 %v576, 0.0
    %v633 = vmax.f32 %v579, 0.0
    %v634 = vmax.f32 %v581, 0.0
    %v635 = vmax.f32 %v584, 0.0
    %v636 = vmax.f32 %v586, 0.0
    %v637 = vmax.f32 %v589, 0.0
    %v638 = vmax.f32 %v591, 0.0
    %v639 = vmax.f32 %v594, 0.0
    %v640 = vmax.f32 %v596, 0.0
    %v641 = vmax.f32 %v599, 0.0
    %v642 = vmax.f32 %v601, 0.0
    %v643 = vmax.f32 %v604, 0.0
    %v644 = vmax.f32 %v606, 0.0
    %v645 = vmax.f32 %v609, 0.0
    %v646 = vmax.f32 %v611, 0.0
    %v647 = vmax.f32 %v614, 0.0
    %v648 = vpack.c.bf16 %v619, %v617
    %v649 = vpack.c.bf16 %v620, %v618
    %v650 = vpack.c.bf16 %v621, %v619
    %v651 = vpack.c.bf16 %v623, %v621
    %v652 = vpack.c.bf16 %v624, %v622
    %v653 = vpack.c.bf16 %v625, %v623
    %v654 = vpack.c.bf16 %v627, %v625
    %v655 = vpack.c.bf16 %v628, %v626
    %v656 = vpack.c.bf16 %v629, %v627
    %v657 = vpack.c.bf16 %v631, %v629
    %v658 = vpack.c.bf16 %v632, %v630
    %v659 = vpack.c.bf16 %v633, %v631
    %v660 = vpack.c.bf16 %v635, %v633
    %v661 = vpack.c.bf16 %v636, %v634
    %v662 = vpack.c.bf16 %v637, %v635
    %v663 = vpack.c.bf16 %v639, %v637
    %v664 = vpack.c.bf16 %v640, %v638
    %v665 = vpack.c.bf16 %v641, %v639
    %v666 = vpack.c.bf16 %v643, %v641
    %v667 = vpack.c.bf16 %v644, %v642
    %v668 = vpack.c.bf16 %v645, %v643
    %v669 = vpack.c.bf16 %v645, %v645
    %v670 = vpack.c.bf16 %v646, %v646
    %v671 = vpack.c.bf16 %v647, %v647
    %v672 = vld [vmem:[#allocation2 + $0xc0] sm:$0xf]
    %v673 = vld [vmem:[#allocation2 + $0xc8] sm:$0xf]
    %v674 = vld [vmem:[#allocation2 + $0xd0] sm:$0xf]
    %v675 = vld [vmem:[#allocation2 + $0xd8] sm:$0xf]
    %v676 = vld [vmem:[#allocation2 + $0xe0] sm:$0xf]
    %v677 = vld [vmem:[#allocation2 + $0xe8] sm:$0xf]
    %v678 = vld [vmem:[#allocation2 + $0xf0] sm:$0xf]
    %v679 = vld [vmem:[#allocation2 + $0xf8] sm:$0xf]
    %v680 = vld [vmem:[#allocation2 + $0x100] sm:$0xf]
    %v681 = vld [vmem:[#allocation2 + $0x108] sm:$0xf]
    %v682 = vld [vmem:[#allocation2 + $0x110] sm:$0xf]
    %v683 = vld [vmem:[#allocation2 + $0x118] sm:$0xf]
    %v684 = vld [vmem:[#allocation2 + $0x120] sm:$0xf]
    %v685 = vld [vmem:[#allocation2 + $0x128] sm:$0xf]
    %v686 = vld [vmem:[#allocation2 + $0x130] sm:$0xf]
    %v687 = vld [vmem:[#allocation2 + $0x138] sm:$0xf]
    %v688 = vld [vmem:[#allocation2 + $0x140] sm:$0xf]
    %v689 = vld [vmem:[#allocation2 + $0x148] sm:$0xf]
    %v690 = vld [vmem:[#allocation2 + $0x150] sm:$0xf]
    %v691 = vld [vmem:[#allocation2 + $0x158] sm:$0xf]
    %v692 = vld [vmem:[#allocation2 + $0x160] sm:$0xf]
    %v693 = vld [vmem:[#allocation2 + $0x168] sm:$0xf]
    %v694 = vld [vmem:[#allocation2 + $0x170] sm:$0xf]
    %v695 = vld [vmem:[#allocation2 + $0x178] sm:$0xf]
    %v696 = vld [vmem:[#allocation2 + $0x180] sm:$0xf]
    %v697 = vld [vmem:[#allocation2 + $0x188] sm:$0xf]
    %v698 = vld [vmem:[#allocation2 + $0x190] sm:$0xf]
    %v699 = vld [vmem:[#allocation2 + $0x198] sm:$0xf]
    %v700 = vld [vmem:[#allocation2 + $0x1a0] sm:$0xf]
    %v701 = vld [vmem:[#allocation2 + $0x1a8] sm:$0xf]
    %v702 = vld [vmem:[#allocation2 + $0x1b0] sm:$0xf]
    %v703 = vld [vmem:[#allocation2 + $0x1b8] sm:$0xf]
    %v704 = vld [vmem:[#allocation2 + $0x1c0] sm:$0xf]
    %v705 = vld [vmem:[#allocation2 + $0x1c8] sm:$0xf]
    %v706 = vld [vmem:[#allocation2 + $0x1d0] sm:$0xf]
    %v707 = vld [vmem:[#allocation2 + $0x1d8] sm:$0xf]
    %v708 = vld [vmem:[#allocation2 + $0x1e0] sm:$0xf]
    %v709 = vld [vmem:[#allocation2 + $0x1e8] sm:$0xf]
    %v710 = vld [vmem:[#allocation2 + $0x1f0] sm:$0xf]
    %v711 = vld [vmem:[#allocation2 + $0x1f8] sm:$0xf]
    %v712 = vld [vmem:[#allocation2 + $0x200] sm:$0xf]
    %v713 = vld [vmem:[#allocation2 + $0x208] sm:$0xf]
    %v714 = vld [vmem:[#allocation2 + $0x210] sm:$0xf]
    %v715 = vld [vmem:[#allocation2 + $0x218] sm:$0xf]
    %v716 = vld [vmem:[#allocation2 + $0x220] sm:$0xf]
    %v717 = vld [vmem:[#allocation2 + $0x228] sm:$0xf]
    %v718 = vld [vmem:[#allocation2 + $0x230] sm:$0xf]
    %v719 = vld [vmem:[#allocation2 + $0x238] sm:$0xf]
    %v720 = vld [vmem:[#allocation4 + $0x1] ss:$0 sm:$0xff]
    %v769 = vunpack.c.l.b16 %v672
    %v770 = vunpack.c.l.b16 %v673
    %v771 = vunpack.c.l.b16 %v674
    %v772 = vunpack.c.l.b16 %v675
    %v773 = vunpack.c.l.b16 %v676
    %v774 = vunpack.c.l.b16 %v677
    %v775 = vunpack.c.l.b16 %v678
    %v776 = vunpack.c.l.b16 %v679
    %v777 = vunpack.c.l.b16 %v680
    %v778 = vunpack.c.l.b16 %v681
    %v779 = vunpack.c.l.b16 %v682
    %v780 = vunpack.c.l.b16 %v683
    %v781 = vunpack.c.l.b16 %v684
    %v782 = vunpack.c.l.b16 %v685
    %v783 = vunpack.c.l.b16 %v686
    %v784 = vunpack.c.l.b16 %v687
    %v785 = vunpack.c.l.b16 %v688
    %v786 = vunpack.c.l.b16 %v689
    %v787 = vunpack.c.l.b16 %v690
    %v788 = vunpack.c.l.b16 %v691
    %v789 = vunpack.c.l.b16 %v692
    %v790 = vunpack.c.l.b16 %v693
    %v791 = vunpack.c.l.b16 %v694
    %v792 = vunpack.c.l.b16 %v695
    %v793 = vunpack.c.l.b16 %v696
    %v794 = vunpack.c.l.b16 %v697
    %v795 = vunpack.c.l.b16 %v698
    %v796 = vunpack.c.l.b16 %v699
    %v797 = vunpack.c.l.b16 %v700
    %v798 = vunpack.c.l.b16 %v701
    %v799 = vunpack.c.l.b16 %v702
    %v800 = vunpack.c.l.b16 %v703
    %v801 = vunpack.c.l.b16 %v704
    %v802 = vunpack.c.l.b16 %v705
    %v803 = vunpack.c.l.b16 %v706
    %v804 = vunpack.c.l.b16 %v707
    %v805 = vunpack.c.l.b16 %v708
    %v806 = vunpack.c.l.b16 %v709
    %v807 = vunpack.c.l.b16 %v710
    %v808 = vunpack.c.l.b16 %v711
    %v809 = vunpack.c.l.b16 %v712
    %v810 = vunpack.c.l.b16 %v713
    %v811 = vunpack.c.l.b16 %v714
    %v812 = vunpack.c.l.b16 %v715
    %v813 = vunpack.c.l.b16 %v716
    %v814 = vunpack.c.l.b16 %v717
    %v815 = vunpack.c.l.b16 %v718
    %v816 = vunpack.c.l.b16 %v719
    %v817 = vpack.c.b16 %v770, %v769
    %v818 = vpack.c.b16 %v772, %v771
    %v819 = vpack.c.b16 %v774, %v773
    %v820 = vpack.c.b16 %v776, %v775
    %v821 = vpack.c.b16 %v778, %v777
    %v822 = vpack.c.b16 %v780, %v779
    %v823 = vpack.c.b16 %v782, %v781
    %v824 = vpack.c.b16 %v784, %v783
    %v825 = vpack.c.b16 %v786, %v785
    %v826 = vpack.c.b16 %v788, %v787
    %v827 = vpack.c.b16 %v790, %v789
    %v828 = vpack.c.b16 %v792, %v791
    %v829 = vpack.c.b16 %v794, %v793
    %v830 = vpack.c.b16 %v796, %v795
    %v831 = vpack.c.b16 %v798, %v797
    %v832 = vpack.c.b16 %v800, %v799
    %v833 = vpack.c.b16 %v802, %v801
    %v834 = vpack.c.b16 %v804, %v803
    %v835 = vpack.c.b16 %v806, %v805
    %v836 = vpack.c.b16 %v808, %v807
    %v837 = vpack.c.b16 %v810, %v809
    %v838 = vpack.c.b16 %v812, %v811
    %v839 = vpack.c.b16 %v814, %v813
    %v840 = vpack.c.b16 %v816, %v815
    %865 = vmatpush.bf16.msra.mxu0 %v824
    %866 = vmatpush.bf16.msra.mxu0 %v823
    %867 = vmatpush.bf16.msra.mxu0 %v822
    %868 = vmatpush.bf16.msra.mxu0 %v821
    %869 = vmatpush.bf16.msra.mxu0 %v820
    %870 = vmatpush.bf16.msra.mxu0 %v819
    %871 = vmatpush.bf16.msra.mxu0 %v818
    %872 = vmatpush.bf16.msra.mxu0 %v817
    %873 = vmatmul.bf16.gmra.mxu0 %v648
    %v874 = vpop.f32.mrf.mxu0
    %v875 = vadd.f32 %v720, %v874
    %v876 = vpop.f32.mrf.mxu0
    %v877 = vadd.f32 %v720, %v876
    %878 = vmatmul.bf16.gmra.mxu0 %v651
    %v879 = vpop.f32.mrf.mxu0
    %v880 = vadd.f32 %v720, %v879
    %v881 = vpop.f32.mrf.mxu0
    %v882 = vadd.f32 %v720, %v881
    %883 = vmatmul.bf16.gmra.mxu0 %v654
    %v884 = vpop.f32.mrf.mxu0
    %v885 = vadd.f32 %v720, %v884
    %v886 = vpop.f32.mrf.mxu0
    %v887 = vadd.f32 %v720, %v886
    %888 = vmatmul.bf16.gmra.mxu0 %v657
    %v889 = vpop.f32.mrf.mxu0
    %v890 = vadd.f32 %v720, %v889
    %v891 = vpop.f32.mrf.mxu0
    %v892 = vadd.f32 %v720, %v891
    %893 = vmatmul.bf16.gmra.mxu0 %v660
    %v894 = vpop.f32.mrf.mxu0
    %v895 = vadd.f32 %v720, %v894
    %v896 = vpop.f32.mrf.mxu0
    %v897 = vadd.f32 %v720, %v896
    %898 = vmatmul.bf16.gmra.mxu0 %v663
    %v899 = vpop.f32.mrf.mxu0
    %v900 = vadd.f32 %v720, %v899
    %v901 = vpop.f32.mrf.mxu0
    %v902 = vadd.f32 %v720, %v901
    %903 = vmatmul.bf16.gmra.mxu0 %v666
    %v904 = vpop.f32.mrf.mxu0
    %v905 = vadd.f32 %v720, %v904
    %v906 = vpop.f32.mrf.mxu0
    %v907 = vadd.f32 %v720, %v906
    %908 = vmatmul.bf16.gmra.mxu0 %v669
    %v909 = vpop.f32.mrf.mxu0
    %v910 = vadd.f32 %v720, %v909
    %v911 = vpop.f32.mrf.mxu0
    %912 = vdwg.mxu0
    %913 = vmatpush.bf16.msra.mxu0 %v832
    %914 = vmatpush.bf16.msra.mxu0 %v831
    %915 = vmatpush.bf16.msra.mxu0 %v830
    %916 = vmatpush.bf16.msra.mxu0 %v829
    %917 = vmatpush.bf16.msra.mxu0 %v828
    %918 = vmatpush.bf16.msra.mxu0 %v827
    %919 = vmatpush.bf16.msra.mxu0 %v826
    %920 = vmatpush.bf16.msra.mxu0 %v825
    %921 = vmatmul.bf16.gmra.mxu0 %v649
    %v922 = vpop.f32.mrf.mxu0
    %v923 = vadd.f32 %v875, %v922
    %v924 = vpop.f32.mrf.mxu0
    %v925 = vadd.f32 %v877, %v924
    %926 = vmatmul.bf16.gmra.mxu0 %v652
    %v927 = vpop.f32.mrf.mxu0
    %v928 = vadd.f32 %v880, %v927
    %v929 = vpop.f32.mrf.mxu0
    %v930 = vadd.f32 %v882, %v929
    %931 = vmatmul.bf16.gmra.mxu0 %v655
    %v932 = vpop.f32.mrf.mxu0
    %v933 = vadd.f32 %v885, %v932
    %v934 = vpop.f32.mrf.mxu0
    %v935 = vadd.f32 %v887, %v934
    %936 = vmatmul.bf16.gmra.mxu0 %v658
    %v937 = vpop.f32.mrf.mxu0
    %v938 = vadd.f32 %v890, %v937
    %v939 = vpop.f32.mrf.mxu0
    %v940 = vadd.f32 %v892, %v939
    %941 = vmatmul.bf16.gmra.mxu0 %v661
    %v942 = vpop.f32.mrf.mxu0
    %v943 = vadd.f32 %v895, %v942
    %v944 = vpop.f32.mrf.mxu0
    %v945 = vadd.f32 %v897, %v944
    %946 = vmatmul.bf16.gmra.mxu0 %v664
    %v947 = vpop.f32.mrf.mxu0
    %v948 = vadd.f32 %v900, %v947
    %v949 = vpop.f32.mrf.mxu0
    %v950 = vadd.f32 %v902, %v949
    %951 = vmatmul.bf16.gmra.mxu0 %v667
    %v952 = vpop.f32.mrf.mxu0
    %v953 = vadd.f32 %v905, %v952
    %v954 = vpop.f32.mrf.mxu0
    %v955 = vadd.f32 %v907, %v954
    %956 = vmatmul.bf16.gmra.mxu0 %v670
    %v957 = vpop.f32.mrf.mxu0
    %v958 = vadd.f32 %v910, %v957
    %v959 = vpop.f32.mrf.mxu0
    %960 = vdwg.mxu0
    %961 = vmatpush.bf16.msra.mxu0 %v840
    %962 = vmatpush.bf16.msra.mxu0 %v839
    %963 = vmatpush.bf16.msra.mxu0 %v838
    %964 = vmatpush.bf16.msra.mxu0 %v837
    %965 = vmatpush.bf16.msra.mxu0 %v836
    %966 = vmatpush.bf16.msra.mxu0 %v835
    %967 = vmatpush.bf16.msra.mxu0 %v834
    %968 = vmatpush.bf16.msra.mxu0 %v833
    %969 = vmatmul.bf16.gmra.mxu0 %v650
    %v970 = vpop.f32.mrf.mxu0
    %v971 = vadd.f32 %v923, %v970
    %v972 = vpop.f32.mrf.mxu0
    %v973 = vadd.f32 %v925, %v972
    %974 = vmatmul.bf16.gmra.mxu0 %v653
    %v975 = vpop.f32.mrf.mxu0
    %v976 = vadd.f32 %v928, %v975
    %v977 = vpop.f32.mrf.mxu0
    %v978 = vadd.f32 %v930, %v977
    %979 = vmatmul.bf16.gmra.mxu0 %v656
    %v980 = vpop.f32.mrf.mxu0
    %v981 = vadd.f32 %v933, %v980
    %v982 = vpop.f32.mrf.mxu0
    %v983 = vadd.f32 %v935, %v982
    %984 = vmatmul.bf16.gmra.mxu0 %v659
    %v985 = vpop.f32.mrf.mxu0
    %v986 = vadd.f32 %v938, %v985
    %v987 = vpop.f32.mrf.mxu0
    %v988 = vadd.f32 %v940, %v987
    %989 = vmatmul.bf16.gmra.mxu0 %v662
    %v990 = vpop.f32.mrf.mxu0
    %v991 = vadd.f32 %v943, %v990
    %v992 = vpop.f32.mrf.mxu0
    %v993 = vadd.f32 %v945, %v992
    %994 = vmatmul.bf16.gmra.mxu0 %v665
    %v995 = vpop.f32.mrf.mxu0
    %v996 = vadd.f32 %v948, %v995
    %v997 = vpop.f32.mrf.mxu0
    %v998 = vadd.f32 %v950, %v997
    %999 = vmatmul.bf16.gmra.mxu0 %v668
    %v1000 = vpop.f32.mrf.mxu0
    %v1001 = vadd.f32 %v953, %v1000
    %v1002 = vpop.f32.mrf.mxu0
    %v1003 = vadd.f32 %v955, %v1002
    %1004 = vmatmul.bf16.gmra.mxu0 %v671
    %v1005 = vpop.f32.mrf.mxu0
    %v1006 = vadd.f32 %v958, %v1005
    %v1007 = vpop.f32.mrf.mxu0
    %1008 = vdwg.mxu0
    %v1009 = vmax.f32 %v971, 0.0
    %v1010 = vmax.f32 %v973, 0.0
    %v1011 = vmax.f32 %v976, 0.0
    %v1012 = vmax.f32 %v978, 0.0
    %v1013 = vmax.f32 %v981, 0.0
    %v1014 = vmax.f32 %v983, 0.0
    %v1015 = vmax.f32 %v986, 0.0
    %v1016 = vmax.f32 %v988, 0.0
    %v1017 = vmax.f32 %v991, 0.0
    %v1018 = vmax.f32 %v993, 0.0
    %v1019 = vmax.f32 %v996, 0.0
    %v1020 = vmax.f32 %v998, 0.0
    %v1021 = vmax.f32 %v1001, 0.0
    %v1022 = vmax.f32 %v1003, 0.0
    %v1023 = vmax.f32 %v1006, 0.0
    %v1024 = vpack.c.bf16 %v1011, %v1009
    %v1025 = vpack.c.bf16 %v1012, %v1010
    %v1026 = vpack.c.bf16 %v1013, %v1011
    %v1027 = vpack.c.bf16 %v1015, %v1013
    %v1028 = vpack.c.bf16 %v1016, %v1014
    %v1029 = vpack.c.bf16 %v1017, %v1015
    %v1030 = vpack.c.bf16 %v1019, %v1017
    %v1031 = vpack.c.bf16 %v1020, %v1018
    %v1032 = vpack.c.bf16 %v1021, %v1019
    %v1033 = vpack.c.bf16 %v1021, %v1021
    %v1034 = vpack.c.bf16 %v1022, %v1022
    %v1035 = vpack.c.bf16 %v1023, %v1023
    %v1036 = vld [vmem:[#allocation2 + $0x240] sm:$0xf]
    %v1037 = vld [vmem:[#allocation2 + $0x248] sm:$0xf]
    %v1038 = vld [vmem:[#allocation2 + $0x250] sm:$0xf]
    %v1039 = vld [vmem:[#allocation2 + $0x258] sm:$0xf]
    %v1040 = vld [vmem:[#allocation2 + $0x260] sm:$0xf]
    %v1041 = vld [vmem:[#allocation2 + $0x268] sm:$0xf]
    %v1042 = vld [vmem:[#allocation2 + $0x270] sm:$0xf]
    %v1043 = vld [vmem:[#allocation2 + $0x278] sm:$0xf]
    %v1044 = vld [vmem:[#allocation2 + $0x280] sm:$0xf]
    %v1045 = vld [vmem:[#allocation2 + $0x288] sm:$0xf]
    %v1046 = vld [vmem:[#allocation2 + $0x290] sm:$0xf]
    %v1047 = vld [vmem:[#allocation2 + $0x298] sm:$0xf]
    %v1048 = vld [vmem:[#allocation2 + $0x2a0] sm:$0xf]
    %v1049 = vld [vmem:[#allocation2 + $0x2a8] sm:$0xf]
    %v1050 = vld [vmem:[#allocation2 + $0x2b0] sm:$0xf]
    %v1051 = vld [vmem:[#allocation2 + $0x2b8] sm:$0xf]
    %v1052 = vld [vmem:[#allocation2 + $0x2c0] sm:$0xf]
    %v1053 = vld [vmem:[#allocation2 + $0x2c8] sm:$0xf]
    %v1054 = vld [vmem:[#allocation2 + $0x2d0] sm:$0xf]
    %v1055 = vld [vmem:[#allocation2 + $0x2d8] sm:$0xf]
    %v1056 = vld [vmem:[#allocation2 + $0x2e0] sm:$0xf]
    %v1057 = vld [vmem:[#allocation2 + $0x2e8] sm:$0xf]
    %v1058 = vld [vmem:[#allocation2 + $0x2f0] sm:$0xf]
    %v1059 = vld [vmem:[#allocation2 + $0x2f8] sm:$0xf]
    %v1060 = vld [vmem:[#allocation2 + $0x300] sm:$0xf]
    %v1061 = vld [vmem:[#allocation2 + $0x308] sm:$0xf]
    %v1062 = vld [vmem:[#allocation2 + $0x310] sm:$0xf]
    %v1063 = vld [vmem:[#allocation2 + $0x318] sm:$0xf]
    %v1064 = vld [vmem:[#allocation2 + $0x320] sm:$0xf]
    %v1065 = vld [vmem:[#allocation2 + $0x328] sm:$0xf]
    %v1066 = vld [vmem:[#allocation2 + $0x330] sm:$0xf]
    %v1067 = vld [vmem:[#allocation2 + $0x338] sm:$0xf]
    %v1068 = vld [vmem:[#allocation2 + $0x340] sm:$0xf]
    %v1069 = vld [vmem:[#allocation2 + $0x348] sm:$0xf]
    %v1070 = vld [vmem:[#allocation2 + $0x350] sm:$0xf]
    %v1071 = vld [vmem:[#allocation2 + $0x358] sm:$0xf]
    %v1072 = vld [vmem:[#allocation2 + $0x360] sm:$0xf]
    %v1073 = vld [vmem:[#allocation2 + $0x368] sm:$0xf]
    %v1074 = vld [vmem:[#allocation2 + $0x370] sm:$0xf]
    %v1075 = vld [vmem:[#allocation2 + $0x378] sm:$0xf]
    %v1076 = vld [vmem:[#allocation2 + $0x380] sm:$0xf]
    %v1077 = vld [vmem:[#allocation2 + $0x388] sm:$0xf]
    %v1078 = vld [vmem:[#allocation2 + $0x390] sm:$0xf]
    %v1079 = vld [vmem:[#allocation2 + $0x398] sm:$0xf]
    %v1080 = vld [vmem:[#allocation2 + $0x3a0] sm:$0xf]
    %v1081 = vld [vmem:[#allocation2 + $0x3a8] sm:$0xf]
    %v1082 = vld [vmem:[#allocation2 + $0x3b0] sm:$0xf]
    %v1083 = vld [vmem:[#allocation2 + $0x3b8] sm:$0xf]
    %v1084 = vld [vmem:[#allocation4 + $0x2] ss:$0 sm:$0xff]
    %v1133 = vunpack.c.l.b16 %v1036
    %v1134 = vunpack.c.l.b16 %v1037
    %v1135 = vunpack.c.l.b16 %v1038
    %v1136 = vunpack.c.l.b16 %v1039
    %v1137 = vunpack.c.l.b16 %v1040
    %v1138 = vunpack.c.l.b16 %v1041
    %v1139 = vunpack.c.l.b16 %v1042
    %v1140 = vunpack.c.l.b16 %v1043
    %v1141 = vunpack.c.l.b16 %v1044
    %v1142 = vunpack.c.l.b16 %v1045
    %v1143 = vunpack.c.l.b16 %v1046
    %v1144 = vunpack.c.l.b16 %v1047
    %v1145 = vunpack.c.l.b16 %v1048
    %v1146 = vunpack.c.l.b16 %v1049
    %v1147 = vunpack.c.l.b16 %v1050
    %v1148 = vunpack.c.l.b16 %v1051
    %v1149 = vunpack.c.l.b16 %v1052
    %v1150 = vunpack.c.l.b16 %v1053
    %v1151 = vunpack.c.l.b16 %v1054
    %v1152 = vunpack.c.l.b16 %v1055
    %v1153 = vunpack.c.l.b16 %v1056
    %v1154 = vunpack.c.l.b16 %v1057
    %v1155 = vunpack.c.l.b16 %v1058
    %v1156 = vunpack.c.l.b16 %v1059
    %v1157 = vunpack.c.l.b16 %v1060
    %v1158 = vunpack.c.l.b16 %v1061
    %v1159 = vunpack.c.l.b16 %v1062
    %v1160 = vunpack.c.l.b16 %v1063
    %v1161 = vunpack.c.l.b16 %v1064
    %v1162 = vunpack.c.l.b16 %v1065
    %v1163 = vunpack.c.l.b16 %v1066
    %v1164 = vunpack.c.l.b16 %v1067
    %v1165 = vunpack.c.l.b16 %v1068
    %v1166 = vunpack.c.l.b16 %v1069
    %v1167 = vunpack.c.l.b16 %v1070
    %v1168 = vunpack.c.l.b16 %v1071
    %v1169 = vunpack.c.l.b16 %v1072
    %v1170 = vunpack.c.l.b16 %v1073
    %v1171 = vunpack.c.l.b16 %v1074
    %v1172 = vunpack.c.l.b16 %v1075
    %v1173 = vunpack.c.l.b16 %v1076
    %v1174 = vunpack.c.l.b16 %v1077
    %v1175 = vunpack.c.l.b16 %v1078
    %v1176 = vunpack.c.l.b16 %v1079
    %v1177 = vunpack.c.l.b16 %v1080
    %v1178 = vunpack.c.l.b16 %v1081
    %v1179 = vunpack.c.l.b16 %v1082
    %v1180 = vunpack.c.l.b16 %v1083
    %v1181 = vpack.c.b16 %v1134, %v1133
    %v1182 = vpack.c.b16 %v1136, %v1135
    %v1183 = vpack.c.b16 %v1138, %v1137
    %v1184 = vpack.c.b16 %v1140, %v1139
    %v1185 = vpack.c.b16 %v1142, %v1141
    %v1186 = vpack.c.b16 %v1144, %v1143
    %v1187 = vpack.c.b16 %v1146, %v1145
    %v1188 = vpack.c.b16 %v1148, %v1147
    %v1189 = vpack.c.b16 %v1150, %v1149
    %v1190 = vpack.c.b16 %v1152, %v1151
    %v1191 = vpack.c.b16 %v1154, %v1153
    %v1192 = vpack.c.b16 %v1156, %v1155
    %v1193 = vpack.c.b16 %v1158, %v1157
    %v1194 = vpack.c.b16 %v1160, %v1159
    %v1195 = vpack.c.b16 %v1162, %v1161
    %v1196 = vpack.c.b16 %v1164, %v1163
    %v1197 = vpack.c.b16 %v1166, %v1165
    %v1198 = vpack.c.b16 %v1168, %v1167
    %v1199 = vpack.c.b16 %v1170, %v1169
    %v1200 = vpack.c.b16 %v1172, %v1171
    %v1201 = vpack.c.b16 %v1174, %v1173
    %v1202 = vpack.c.b16 %v1176, %v1175
    %v1203 = vpack.c.b16 %v1178, %v1177
    %v1204 = vpack.c.b16 %v1180, %v1179
    %1229 = vmatpush.bf16.msra.mxu0 %v1188
    %1230 = vmatpush.bf16.msra.mxu0 %v1187
    %1231 = vmatpush.bf16.msra.mxu0 %v1186
    %1232 = vmatpush.bf16.msra.mxu0 %v1185
    %1233 = vmatpush.bf16.msra.mxu0 %v1184
    %1234 = vmatpush.bf16.msra.mxu0 %v1183
    %1235 = vmatpush.bf16.msra.mxu0 %v1182
    %1236 = vmatpush.bf16.msra.mxu0 %v1181
    %1237 = vmatmul.bf16.gmra.mxu0 %v1024
    %v1238 = vpop.f32.mrf.mxu0
    %v1239 = vadd.f32 %v1084, %v1238
    %v1240 = vpop.f32.mrf.mxu0
    %v1241 = vadd.f32 %v1084, %v1240
    %1242 = vmatmul.bf16.gmra.mxu0 %v1027
    %v1243 = vpop.f32.mrf.mxu0
    %v1244 = vadd.f32 %v1084, %v1243
    %v1245 = vpop.f32.mrf.mxu0
    %v1246 = vadd.f32 %v1084, %v1245
    %1247 = vmatmul.bf16.gmra.mxu0 %v1030
    %v1248 = vpop.f32.mrf.mxu0
    %v1249 = vadd.f32 %v1084, %v1248
    %v1250 = vpop.f32.mrf.mxu0
    %v1251 = vadd.f32 %v1084, %v1250
    %1252 = vmatmul.bf16.gmra.mxu0 %v1033
    %v1253 = vpop.f32.mrf.mxu0
    %v1254 = vadd.f32 %v1084, %v1253
    %v1255 = vpop.f32.mrf.mxu0
    %1256 = vdwg.mxu0
    %1257 = vmatpush.bf16.msra.mxu0 %v1196
    %1258 = vmatpush.bf16.msra.mxu0 %v1195
    %1259 = vmatpush.bf16.msra.mxu0 %v1194
    %1260 = vmatpush.bf16.msra.mxu0 %v1193
    %1261 = vmatpush.bf16.msra.mxu0 %v1192
    %1262 = vmatpush.bf16.msra.mxu0 %v1191
    %1263 = vmatpush.bf16.msra.mxu0 %v1190
    %1264 = vmatpush.bf16.msra.mxu0 %v1189
    %1265 = vmatmul.bf16.gmra.mxu0 %v1025
    %v1266 = vpop.f32.mrf.mxu0
    %v1267 = vadd.f32 %v1239, %v1266
    %v1268 = vpop.f32.mrf.mxu0
    %v1269 = vadd.f32 %v1241, %v1268
    %1270 = vmatmul.bf16.gmra.mxu0 %v1028
    %v1271 = vpop.f32.mrf.mxu0
    %v1272 = vadd.f32 %v1244, %v1271
    %v1273 = vpop.f32.mrf.mxu0
    %v1274 = vadd.f32 %v1246, %v1273
    %1275 = vmatmul.bf16.gmra.mxu0 %v1031
    %v1276 = vpop.f32.mrf.mxu0
    %v1277 = vadd.f32 %v1249, %v1276
    %v1278 = vpop.f32.mrf.mxu0
    %v1279 = vadd.f32 %v1251, %v1278
    %1280 = vmatmul.bf16.gmra.mxu0 %v1034
    %v1281 = vpop.f32.mrf.mxu0
    %v1282 = vadd.f32 %v1254, %v1281
    %v1283 = vpop.f32.mrf.mxu0
    %1284 = vdwg.mxu0
    %1285 = vmatpush.bf16.msra.mxu0 %v1204
    %1286 = vmatpush.bf16.msra.mxu0 %v1203
    %1287 = vmatpush.bf16.msra.mxu0 %v1202
    %1288 = vmatpush.bf16.msra.mxu0 %v1201
    %1289 = vmatpush.bf16.msra.mxu0 %v1200
    %1290 = vmatpush.bf16.msra.mxu0 %v1199
    %1291 = vmatpush.bf16.msra.mxu0 %v1198
    %1292 = vmatpush.bf16.msra.mxu0 %v1197
    %1293 = vmatmul.bf16.gmra.mxu0 %v1026
    %v1294 = vpop.f32.mrf.mxu0
    %v1295 = vadd.f32 %v1267, %v1294
    %v1296 = vpop.f32.mrf.mxu0
    %v1297 = vadd.f32 %v1269, %v1296
    %1298 = vmatmul.bf16.gmra.mxu0 %v1029
    %v1299 = vpop.f32.mrf.mxu0
    %v1300 = vadd.f32 %v1272, %v1299
    %v1301 = vpop.f32.mrf.mxu0
    %v1302 = vadd.f32 %v1274, %v1301
    %1303 = vmatmul.bf16.gmra.mxu0 %v1032
    %v1304 = vpop.f32.mrf.mxu0
    %v1305 = vadd.f32 %v1277, %v1304
    %v1306 = vpop.f32.mrf.mxu0
    %v1307 = vadd.f32 %v1279, %v1306
    %1308 = vmatmul.bf16.gmra.mxu0 %v1035
    %v1309 = vpop.f32.mrf.mxu0
    %v1310 = vadd.f32 %v1282, %v1309
    %v1311 = vpop.f32.mrf.mxu0
    %1312 = vdwg.mxu0
    %v1313 = vmax.f32 %v1295, 0.0
    %v1314 = vmax.f32 %v1297, 0.0
    %v1315 = vmax.f32 %v1300, 0.0
    %v1316 = vmax.f32 %v1302, 0.0
    %v1317 = vmax.f32 %v1305, 0.0
    %v1318 = vmax.f32 %v1307, 0.0
    %v1319 = vmax.f32 %v1310, 0.0
    %v1320 = vpack.c.bf16 %v1314, %v1313
    %v1321 = vpack.c.bf16 %v1315, %v1314
    %v1322 = vpack.c.bf16 %v1316, %v1315
    %v1323 = vpack.c.bf16 %v1317, %v1316
    %v1324 = vpack.c.bf16 %v1318, %v1317
    %v1325 = vpack.c.bf16 %v1317, %v1317
    %v1326 = vpack.c.bf16 %v1318, %v1318
    %v1327 = vpack.c.bf16 %v1319, %v1319
    %v1328 = vld [vmem:[#allocation2 + $0x3c0] sm:$0xff]
    %v1329 = vld [vmem:[#allocation2 + $0x3c8] sm:$0xff]
    %v1330 = vld [vmem:[#allocation2 + $0x3d0] sm:$0xff]
    %v1331 = vld [vmem:[#allocation2 + $0x3d8] sm:$0xff]
    %v1332 = vld [vmem:[#allocation2 + $0x3e0] sm:$0xff]
    %v1333 = vld [vmem:[#allocation2 + $0x3e8] sm:$0xff]
    %v1334 = vld [vmem:[#allocation2 + $0x3f0] sm:$0xff]
    %v1335 = vld [vmem:[#allocation2 + $0x3f8] sm:$0xff]
    %v1336 = vld [vmem:[#allocation2 + $0x400] sm:$0xff]
    %v1337 = vld [vmem:[#allocation2 + $0x408] sm:$0xff]
    %v1338 = vld [vmem:[#allocation2 + $0x410] sm:$0xff]
    %v1339 = vld [vmem:[#allocation2 + $0x418] sm:$0xff]
    %v1340 = vld [vmem:[#allocation2 + $0x420] sm:$0xff]
    %v1341 = vld [vmem:[#allocation2 + $0x428] sm:$0xff]
    %v1342 = vld [vmem:[#allocation2 + $0x430] sm:$0xff]
    %v1343 = vld [vmem:[#allocation2 + $0x438] sm:$0xff]
    %v1344 = vld [vmem:[#allocation2 + $0x440] sm:$0xff]
    %v1345 = vld [vmem:[#allocation2 + $0x448] sm:$0xff]
    %v1346 = vld [vmem:[#allocation2 + $0x450] sm:$0xff]
    %v1347 = vld [vmem:[#allocation2 + $0x458] sm:$0xff]
    %v1348 = vld [vmem:[#allocation2 + $0x460] sm:$0xff]
    %v1349 = vld [vmem:[#allocation2 + $0x468] sm:$0xff]
    %v1350 = vld [vmem:[#allocation2 + $0x470] sm:$0xff]
    %v1351 = vld [vmem:[#allocation2 + $0x478] sm:$0xff]
    %v1352 = vld [vmem:[#allocation2 + $0x480] sm:$0xff]
    %v1353 = vld [vmem:[#allocation2 + $0x488] sm:$0xff]
    %v1354 = vld [vmem:[#allocation2 + $0x490] sm:$0xff]
    %v1355 = vld [vmem:[#allocation2 + $0x498] sm:$0xff]
    %v1356 = vld [vmem:[#allocation2 + $0x4a0] sm:$0xff]
    %v1357 = vld [vmem:[#allocation2 + $0x4a8] sm:$0xff]
    %v1358 = vld [vmem:[#allocation2 + $0x4b0] sm:$0xff]
    %v1359 = vld [vmem:[#allocation2 + $0x4b8] sm:$0xff]
    %v1360 = vld [vmem:[#allocation2 + $0x4c0] sm:$0xff]
    %v1361 = vld [vmem:[#allocation2 + $0x4c8] sm:$0xff]
    %v1362 = vld [vmem:[#allocation2 + $0x4d0] sm:$0xff]
    %v1363 = vld [vmem:[#allocation2 + $0x4d8] sm:$0xff]
    %v1364 = vld [vmem:[#allocation2 + $0x4e0] sm:$0xff]
    %v1365 = vld [vmem:[#allocation2 + $0x4e8] sm:$0xff]
    %v1366 = vld [vmem:[#allocation2 + $0x4f0] sm:$0xff]
    %v1367 = vld [vmem:[#allocation2 + $0x4f8] sm:$0xff]
    %v1368 = vld [vmem:[#allocation2 + $0x500] sm:$0xff]
    %v1369 = vld [vmem:[#allocation2 + $0x508] sm:$0xff]
    %v1370 = vld [vmem:[#allocation2 + $0x510] sm:$0xff]
    %v1371 = vld [vmem:[#allocation2 + $0x518] sm:$0xff]
    %v1372 = vld [vmem:[#allocation2 + $0x520] sm:$0xff]
    %v1373 = vld [vmem:[#allocation2 + $0x528] sm:$0xff]
    %v1374 = vld [vmem:[#allocation2 + $0x530] sm:$0xff]
    %v1375 = vld [vmem:[#allocation2 + $0x538] sm:$0xff]
    %s1376 = scalar_lea.vmem [#allocation4], 3
    %v1377 = vld [vmem:[%s1376] ss:$8 sm:$0x3]
    %v1379 = vperm.slane %v1377, 0
    %v1380 = vperm.slane %v1377, 1
    %v1431 = vunpack.c.l.b16 %v1328
    %v1432 = vunpack.c.h.b16 %v1328
    %v1433 = vunpack.c.l.b16 %v1329
    %v1434 = vunpack.c.h.b16 %v1329
    %v1435 = vunpack.c.l.b16 %v1330
    %v1436 = vunpack.c.h.b16 %v1330
    %v1437 = vunpack.c.l.b16 %v1331
    %v1438 = vunpack.c.h.b16 %v1331
    %v1439 = vunpack.c.l.b16 %v1332
    %v1440 = vunpack.c.h.b16 %v1332
    %v1441 = vunpack.c.l.b16 %v1333
    %v1442 = vunpack.c.h.b16 %v1333
    %v1443 = vunpack.c.l.b16 %v1334
    %v1444 = vunpack.c.h.b16 %v1334
    %v1445 = vunpack.c.l.b16 %v1335
    %v1446 = vunpack.c.h.b16 %v1335
    %v1447 = vunpack.c.l.b16 %v1336
    %v1448 = vunpack.c.h.b16 %v1336
    %v1449 = vunpack.c.l.b16 %v1337
    %v1450 = vunpack.c.h.b16 %v1337
    %v1451 = vunpack.c.l.b16 %v1338
    %v1452 = vunpack.c.h.b16 %v1338
    %v1453 = vunpack.c.l.b16 %v1339
    %v1454 = vunpack.c.h.b16 %v1339
    %v1455 = vunpack.c.l.b16 %v1340
    %v1456 = vunpack.c.h.b16 %v1340
    %v1457 = vunpack.c.l.b16 %v1341
    %v1458 = vunpack.c.h.b16 %v1341
    %v1459 = vunpack.c.l.b16 %v1342
    %v1460 = vunpack.c.h.b16 %v1342
    %v1461 = vunpack.c.l.b16 %v1343
    %v1462 = vunpack.c.h.b16 %v1343
    %v1463 = vunpack.c.l.b16 %v1344
    %v1464 = vunpack.c.h.b16 %v1344
    %v1465 = vunpack.c.l.b16 %v1345
    %v1466 = vunpack.c.h.b16 %v1345
    %v1467 = vunpack.c.l.b16 %v1346
    %v1468 = vunpack.c.h.b16 %v1346
    %v1469 = vunpack.c.l.b16 %v1347
    %v1470 = vunpack.c.h.b16 %v1347
    %v1471 = vunpack.c.l.b16 %v1348
    %v1472 = vunpack.c.h.b16 %v1348
    %v1473 = vunpack.c.l.b16 %v1349
    %v1474 = vunpack.c.h.b16 %v1349
    %v1475 = vunpack.c.l.b16 %v1350
    %v1476 = vunpack.c.h.b16 %v1350
    %v1477 = vunpack.c.l.b16 %v1351
    %v1478 = vunpack.c.h.b16 %v1351
    %v1479 = vunpack.c.l.b16 %v1352
    %v1480 = vunpack.c.h.b16 %v1352
    %v1481 = vunpack.c.l.b16 %v1353
    %v1482 = vunpack.c.h.b16 %v1353
    %v1483 = vunpack.c.l.b16 %v1354
    %v1484 = vunpack.c.h.b16 %v1354
    %v1485 = vunpack.c.l.b16 %v1355
    %v1486 = vunpack.c.h.b16 %v1355
    %v1487 = vunpack.c.l.b16 %v1356
    %v1488 = vunpack.c.h.b16 %v1356
    %v1489 = vunpack.c.l.b16 %v1357
    %v1490 = vunpack.c.h.b16 %v1357
    %v1491 = vunpack.c.l.b16 %v1358
    %v1492 = vunpack.c.h.b16 %v1358
    %v1493 = vunpack.c.l.b16 %v1359
    %v1494 = vunpack.c.h.b16 %v1359
    %v1495 = vunpack.c.l.b16 %v1360
    %v1496 = vunpack.c.h.b16 %v1360
    %v1497 = vunpack.c.l.b16 %v1361
    %v1498 = vunpack.c.h.b16 %v1361
    %v1499 = vunpack.c.l.b16 %v1362
    %v1500 = vunpack.c.h.b16 %v1362
    %v1501 = vunpack.c.l.b16 %v1363
    %v1502 = vunpack.c.h.b16 %v1363
    %v1503 = vunpack.c.l.b16 %v1364
    %v1504 = vunpack.c.h.b16 %v1364
    %v1505 = vunpack.c.l.b16 %v1365
    %v1506 = vunpack.c.h.b16 %v1365
    %v1507 = vunpack.c.l.b16 %v1366
    %v1508 = vunpack.c.h.b16 %v1366
    %v1509 = vunpack.c.l.b16 %v1367
    %v1510 = vunpack.c.h.b16 %v1367
    %v1511 = vunpack.c.l.b16 %v1368
    %v1512 = vunpack.c.h.b16 %v1368
    %v1513 = vunpack.c.l.b16 %v1369
    %v1514 = vunpack.c.h.b16 %v1369
    %v1515 = vunpack.c.l.b16 %v1370
    %v1516 = vunpack.c.h.b16 %v1370
    %v1517 = vunpack.c.l.b16 %v1371
    %v1518 = vunpack.c.h.b16 %v1371
    %v1519 = vunpack.c.l.b16 %v1372
    %v1520 = vunpack.c.h.b16 %v1372
    %v1521 = vunpack.c.l.b16 %v1373
    %v1522 = vunpack.c.h.b16 %v1373
    %v1523 = vunpack.c.l.b16 %v1374
    %v1524 = vunpack.c.h.b16 %v1374
    %v1525 = vunpack.c.l.b16 %v1375
    %v1526 = vunpack.c.h.b16 %v1375
    %v1527 = vpack.c.b16 %v1433, %v1431
    %v1528 = vpack.c.b16 %v1434, %v1432
    %v1529 = vpack.c.b16 %v1437, %v1435
    %v1530 = vpack.c.b16 %v1438, %v1436
    %v1531 = vpack.c.b16 %v1441, %v1439
    %v1532 = vpack.c.b16 %v1442, %v1440
    %v1533 = vpack.c.b16 %v1445, %v1443
    %v1534 = vpack.c.b16 %v1446, %v1444
    %v1535 = vpack.c.b16 %v1449, %v1447
    %v1536 = vpack.c.b16 %v1450, %v1448
    %v1537 = vpack.c.b16 %v1453, %v1451
    %v1538 = vpack.c.b16 %v1454, %v1452
    %v1539 = vpack.c.b16 %v1457, %v1455
    %v1540 = vpack.c.b16 %v1458, %v1456
    %v1541 = vpack.c.b16 %v1461, %v1459
    %v1542 = vpack.c.b16 %v1462, %v1460
    %v1543 = vpack.c.b16 %v1465, %v1463
    %v1544 = vpack.c.b16 %v1466, %v1464
    %v1545 = vpack.c.b16 %v1469, %v1467
    %v1546 = vpack.c.b16 %v1470, %v1468
    %v1547 = vpack.c.b16 %v1473, %v1471
    %v1548 = vpack.c.b16 %v1474, %v1472
    %v1549 = vpack.c.b16 %v1477, %v1475
    %v1550 = vpack.c.b16 %v1478, %v1476
    %v1551 = vpack.c.b16 %v1481, %v1479
    %v1552 = vpack.c.b16 %v1482, %v1480
    %v1553 = vpack.c.b16 %v1485, %v1483
    %v1554 = vpack.c.b16 %v1486, %v1484
    %v1555 = vpack.c.b16 %v1489, %v1487
    %v1556 = vpack.c.b16 %v1490, %v1488
    %v1557 = vpack.c.b16 %v1493, %v1491
    %v1558 = vpack.c.b16 %v1494, %v1492
    %v1559 = vpack.c.b16 %v1497, %v1495
    %v1560 = vpack.c.b16 %v1498, %v1496
    %v1561 = vpack.c.b16 %v1501, %v1499
    %v1562 = vpack.c.b16 %v1502, %v1500
    %v1563 = vpack.c.b16 %v1505, %v1503
    %v1564 = vpack.c.b16 %v1506, %v1504
    %v1565 = vpack.c.b16 %v1509, %v1507
    %v1566 = vpack.c.b16 %v1510, %v1508
    %v1567 = vpack.c.b16 %v1513, %v1511
    %v1568 = vpack.c.b16 %v1514, %v1512
    %v1569 = vpack.c.b16 %v1517, %v1515
    %v1570 = vpack.c.b16 %v1518, %v1516
    %v1571 = vpack.c.b16 %v1521, %v1519
    %v1572 = vpack.c.b16 %v1522, %v1520
    %v1573 = vpack.c.b16 %v1525, %v1523
    %v1574 = vpack.c.b16 %v1526, %v1524
    %1623 = vmatpush.bf16.msra.mxu0 %v1541
    %1624 = vmatpush.bf16.msra.mxu0 %v1539
    %1625 = vmatpush.bf16.msra.mxu0 %v1537
    %1626 = vmatpush.bf16.msra.mxu0 %v1535
    %1627 = vmatpush.bf16.msra.mxu0 %v1533
    %1628 = vmatpush.bf16.msra.mxu0 %v1531
    %1629 = vmatpush.bf16.msra.mxu0 %v1529
    %1630 = vmatpush.bf16.msra.mxu0 %v1527
    %1631 = vmatmul.bf16.gmra.mxu0 %v1320
    %v1632 = vpop.f32.mrf.mxu0
    %v1633 = vadd.f32 %v1379, %v1632
    %v1634 = vpop.f32.mrf.mxu0
    %v1635 = vadd.f32 %v1379, %v1634
    %1636 = vmatmul.bf16.gmra.mxu0 %v1322
    %v1637 = vpop.f32.mrf.mxu0
    %v1638 = vadd.f32 %v1379, %v1637
    %v1639 = vpop.f32.mrf.mxu0
    %v1640 = vadd.f32 %v1379, %v1639
    %1641 = vmatmul.bf16.gmra.mxu0 %v1325
    %v1642 = vpop.f32.mrf.mxu0
    %v1643 = vadd.f32 %v1379, %v1642
    %v1644 = vpop.f32.mrf.mxu0
    %1645 = vdwg.mxu0
    %1646 = vmatpush.bf16.msra.mxu0 %v1557
    %1647 = vmatpush.bf16.msra.mxu0 %v1555
    %1648 = vmatpush.bf16.msra.mxu0 %v1553
    %1649 = vmatpush.bf16.msra.mxu0 %v1551
    %1650 = vmatpush.bf16.msra.mxu0 %v1549
    %1651 = vmatpush.bf16.msra.mxu0 %v1547
    %1652 = vmatpush.bf16.msra.mxu0 %v1545
    %1653 = vmatpush.bf16.msra.mxu0 %v1543
    %1654 = vmatmul.bf16.gmra.mxu0 %v1321
    %v1655 = vpop.f32.mrf.mxu0
    %v1656 = vadd.f32 %v1633, %v1655
    %v1657 = vpop.f32.mrf.mxu0
    %v1658 = vadd.f32 %v1635, %v1657
    %1659 = vmatmul.bf16.gmra.mxu0 %v1323
    %v1660 = vpop.f32.mrf.mxu0
    %v1661 = vadd.f32 %v1638, %v1660
    %v1662 = vpop.f32.mrf.mxu0
    %v1663 = vadd.f32 %v1640, %v1662
    %1664 = vmatmul.bf16.gmra.mxu0 %v1326
    %v1665 = vpop.f32.mrf.mxu0
    %v1666 = vadd.f32 %v1643, %v1665
    %v1667 = vpop.f32.mrf.mxu0
    %1668 = vdwg.mxu0
    %1669 = vmatpush.bf16.msra.mxu0 %v1573
    %1670 = vmatpush.bf16.msra.mxu0 %v1571
    %1671 = vmatpush.bf16.msra.mxu0 %v1569
    %1672 = vmatpush.bf16.msra.mxu0 %v1567
    %1673 = vmatpush.bf16.msra.mxu0 %v1565
    %1674 = vmatpush.bf16.msra.mxu0 %v1563
    %1675 = vmatpush.bf16.msra.mxu0 %v1561
    %1676 = vmatpush.bf16.msra.mxu0 %v1559
    %1677 = vmatmul.bf16.gmra.mxu0 %v1322
    %v1678 = vpop.f32.mrf.mxu0
    %v1679 = vadd.f32 %v1656, %v1678
    %v1680 = vpop.f32.mrf.mxu0
    %v1681 = vadd.f32 %v1658, %v1680
    %1682 = vmatmul.bf16.gmra.mxu0 %v1324
    %v1683 = vpop.f32.mrf.mxu0
    %v1684 = vadd.f32 %v1661, %v1683
    %v1685 = vpop.f32.mrf.mxu0
    %v1686 = vadd.f32 %v1663, %v1685
    %1687 = vmatmul.bf16.gmra.mxu0 %v1327
    %v1688 = vpop.f32.mrf.mxu0
    %v1689 = vadd.f32 %v1666, %v1688
    %v1690 = vpop.f32.mrf.mxu0
    %1691 = vdwg.mxu0
    %1692 = vmatpush.bf16.msra.mxu0 %v1542
    %1693 = vmatpush.bf16.msra.mxu0 %v1540
    %1694 = vmatpush.bf16.msra.mxu0 %v1538
    %1695 = vmatpush.bf16.msra.mxu0 %v1536
    %1696 = vmatpush.bf16.msra.mxu0 %v1534
    %1697 = vmatpush.bf16.msra.mxu0 %v1532
    %1698 = vmatpush.bf16.msra.mxu0 %v1530
    %1699 = vmatpush.bf16.msra.mxu0 %v1528
    %1700 = vmatmul.bf16.gmra.mxu0 %v1320
    %v1701 = vpop.f32.mrf.mxu0
    %v1702 = vadd.f32 %v1380, %v1701
    %v1703 = vpop.f32.mrf.mxu0
    %v1704 = vadd.f32 %v1380, %v1703
    %1705 = vmatmul.bf16.gmra.mxu0 %v1322
    %v1706 = vpop.f32.mrf.mxu0
    %v1707 = vadd.f32 %v1380, %v1706
    %v1708 = vpop.f32.mrf.mxu0
    %v1709 = vadd.f32 %v1380, %v1708
    %1710 = vmatmul.bf16.gmra.mxu0 %v1325
    %v1711 = vpop.f32.mrf.mxu0
    %v1712 = vadd.f32 %v1380, %v1711
    %v1713 = vpop.f32.mrf.mxu0
    %1714 = vdwg.mxu0
    %1715 = vmatpush.bf16.msra.mxu0 %v1558
    %1716 = vmatpush.bf16.msra.mxu0 %v1556
    %1717 = vmatpush.bf16.msra.mxu0 %v1554
    %1718 = vmatpush.bf16.msra.mxu0 %v1552
    %1719 = vmatpush.bf16.msra.mxu0 %v1550
    %1720 = vmatpush.bf16.msra.mxu0 %v1548
    %1721 = vmatpush.bf16.msra.mxu0 %v1546
    %1722 = vmatpush.bf16.msra.mxu0 %v1544
    %1723 = vmatmul.bf16.gmra.mxu0 %v1321
    %v1724 = vpop.f32.mrf.mxu0
    %v1725 = vadd.f32 %v1702, %v1724
    %v1726 = vpop.f32.mrf.mxu0
    %v1727 = vadd.f32 %v1704, %v1726
    %1728 = vmatmul.bf16.gmra.mxu0 %v1323
    %v1729 = vpop.f32.mrf.mxu0
    %v1730 = vadd.f32 %v1707, %v1729
    %v1731 = vpop.f32.mrf.mxu0
    %v1732 = vadd.f32 %v1709, %v1731
    %1733 = vmatmul.bf16.gmra.mxu0 %v1326
    %v1734 = vpop.f32.mrf.mxu0
    %v1735 = vadd.f32 %v1712, %v1734
    %v1736 = vpop.f32.mrf.mxu0
    %1737 = vdwg.mxu0
    %1738 = vmatpush.bf16.msra.mxu0 %v1574
    %1739 = vmatpush.bf16.msra.mxu0 %v1572
    %1740 = vmatpush.bf16.msra.mxu0 %v1570
    %1741 = vmatpush.bf16.msra.mxu0 %v1568
    %1742 = vmatpush.bf16.msra.mxu0 %v1566
    %1743 = vmatpush.bf16.msra.mxu0 %v1564
    %1744 = vmatpush.bf16.msra.mxu0 %v1562
    %1745 = vmatpush.bf16.msra.mxu0 %v1560
    %1746 = vmatmul.bf16.gmra.mxu0 %v1322
    %v1747 = vpop.f32.mrf.mxu0
    %v1748 = vadd.f32 %v1725, %v1747
    %v1749 = vpop.f32.mrf.mxu0
    %v1750 = vadd.f32 %v1727, %v1749
    %1751 = vmatmul.bf16.gmra.mxu0 %v1324
    %v1752 = vpop.f32.mrf.mxu0
    %v1753 = vadd.f32 %v1730, %v1752
    %v1754 = vpop.f32.mrf.mxu0
    %v1755 = vadd.f32 %v1732, %v1754
    %1756 = vmatmul.bf16.gmra.mxu0 %v1327
    %v1757 = vpop.f32.mrf.mxu0
    %v1758 = vadd.f32 %v1735, %v1757
    %v1759 = vpop.f32.mrf.mxu0
    %1760 = vdwg.mxu0
    %v1761 = vmax.f32 %v1679, 0.0
    %v1762 = vmax.f32 %v1748, 0.0
    %v1763 = vmax.f32 %v1681, 0.0
    %v1764 = vmax.f32 %v1750, 0.0
    %v1765 = vmax.f32 %v1684, 0.0
    %v1766 = vmax.f32 %v1753, 0.0
    %v1767 = vmax.f32 %v1686, 0.0
    %v1768 = vmax.f32 %v1755, 0.0
    %v1769 = vmax.f32 %v1689, 0.0
    %v1770 = vmax.f32 %v1758, 0.0
    %v1771 = vpack.c.bf16 %v1763, %v1761
    %v1772 = vpack.c.bf16 %v1764, %v1762
    %v1773 = vpack.c.bf16 %v1765, %v1763
    %v1774 = vpack.c.bf16 %v1766, %v1764
    %v1775 = vpack.c.bf16 %v1767, %v1765
    %v1776 = vpack.c.bf16 %v1768, %v1766
    %v1777 = vpack.c.bf16 %v1765, %v1765
    %v1778 = vpack.c.bf16 %v1766, %v1766
    %v1779 = vpack.c.bf16 %v1767, %v1767
    %v1780 = vpack.c.bf16 %v1768, %v1768
    %v1781 = vpack.c.bf16 %v1769, %v1769
    %v1782 = vpack.c.bf16 %v1770, %v1770
    %v1783 = vld [vmem:[#allocation2 + $0x540] sm:$0xff]
    %v1784 = vld [vmem:[#allocation2 + $0x548] sm:$0xff]
    %v1785 = vld [vmem:[#allocation2 + $0x550] sm:$0xff]
    %v1786 = vld [vmem:[#allocation2 + $0x558] sm:$0xff]
    %v1787 = vld [vmem:[#allocation2 + $0x560] sm:$0xff]
    %v1788 = vld [vmem:[#allocation2 + $0x568] sm:$0xff]
    %v1789 = vld [vmem:[#allocation2 + $0x570] sm:$0xff]
    %v1790 = vld [vmem:[#allocation2 + $0x578] sm:$0xff]
    %v1791 = vld [vmem:[#allocation2 + $0x580] sm:$0xff]
    %v1792 = vld [vmem:[#allocation2 + $0x588] sm:$0xff]
    %v1793 = vld [vmem:[#allocation2 + $0x590] sm:$0xff]
    %v1794 = vld [vmem:[#allocation2 + $0x598] sm:$0xff]
    %v1795 = vld [vmem:[#allocation2 + $0x5a0] sm:$0xff]
    %v1796 = vld [vmem:[#allocation2 + $0x5a8] sm:$0xff]
    %v1797 = vld [vmem:[#allocation2 + $0x5b0] sm:$0xff]
    %v1798 = vld [vmem:[#allocation2 + $0x5b8] sm:$0xff]
    %v1799 = vld [vmem:[#allocation2 + $0x5c0] sm:$0xff]
    %v1800 = vld [vmem:[#allocation2 + $0x5c8] sm:$0xff]
    %v1801 = vld [vmem:[#allocation2 + $0x5d0] sm:$0xff]
    %v1802 = vld [vmem:[#allocation2 + $0x5d8] sm:$0xff]
    %v1803 = vld [vmem:[#allocation2 + $0x5e0] sm:$0xff]
    %v1804 = vld [vmem:[#allocation2 + $0x5e8] sm:$0xff]
    %v1805 = vld [vmem:[#allocation2 + $0x5f0] sm:$0xff]
    %v1806 = vld [vmem:[#allocation2 + $0x5f8] sm:$0xff]
    %v1807 = vld [vmem:[#allocation2 + $0x600] sm:$0xff]
    %v1808 = vld [vmem:[#allocation2 + $0x608] sm:$0xff]
    %v1809 = vld [vmem:[#allocation2 + $0x610] sm:$0xff]
    %v1810 = vld [vmem:[#allocation2 + $0x618] sm:$0xff]
    %v1811 = vld [vmem:[#allocation2 + $0x620] sm:$0xff]
    %v1812 = vld [vmem:[#allocation2 + $0x628] sm:$0xff]
    %v1813 = vld [vmem:[#allocation2 + $0x630] sm:$0xff]
    %v1814 = vld [vmem:[#allocation2 + $0x638] sm:$0xff]
    %v1815 = vld [vmem:[#allocation2 + $0x640] sm:$0xff]
    %v1816 = vld [vmem:[#allocation2 + $0x648] sm:$0xff]
    %v1817 = vld [vmem:[#allocation2 + $0x650] sm:$0xff]
    %v1818 = vld [vmem:[#allocation2 + $0x658] sm:$0xff]
    %v1819 = vld [vmem:[#allocation2 + $0x660] sm:$0xff]
    %v1820 = vld [vmem:[#allocation2 + $0x668] sm:$0xff]
    %v1821 = vld [vmem:[#allocation2 + $0x670] sm:$0xff]
    %v1822 = vld [vmem:[#allocation2 + $0x678] sm:$0xff]
    %v1823 = vld [vmem:[#allocation2 + $0x680] sm:$0xff]
    %v1824 = vld [vmem:[#allocation2 + $0x688] sm:$0xff]
    %v1825 = vld [vmem:[#allocation2 + $0x690] sm:$0xff]
    %v1826 = vld [vmem:[#allocation2 + $0x698] sm:$0xff]
    %v1827 = vld [vmem:[#allocation2 + $0x6a0] sm:$0xff]
    %v1828 = vld [vmem:[#allocation2 + $0x6a8] sm:$0xff]
    %v1829 = vld [vmem:[#allocation2 + $0x6b0] sm:$0xff]
    %v1830 = vld [vmem:[#allocation2 + $0x6b8] sm:$0xff]
    %v1831 = vld [vmem:[#allocation2 + $0x6c0] sm:$0xff]
    %v1832 = vld [vmem:[#allocation2 + $0x6c8] sm:$0xff]
    %v1833 = vld [vmem:[#allocation2 + $0x6d0] sm:$0xff]
    %v1834 = vld [vmem:[#allocation2 + $0x6d8] sm:$0xff]
    %v1835 = vld [vmem:[#allocation2 + $0x6e0] sm:$0xff]
    %v1836 = vld [vmem:[#allocation2 + $0x6e8] sm:$0xff]
    %v1837 = vld [vmem:[#allocation2 + $0x6f0] sm:$0xff]
    %v1838 = vld [vmem:[#allocation2 + $0x6f8] sm:$0xff]
    %v1839 = vld [vmem:[#allocation2 + $0x700] sm:$0xff]
    %v1840 = vld [vmem:[#allocation2 + $0x708] sm:$0xff]
    %v1841 = vld [vmem:[#allocation2 + $0x710] sm:$0xff]
    %v1842 = vld [vmem:[#allocation2 + $0x718] sm:$0xff]
    %v1843 = vld [vmem:[#allocation2 + $0x720] sm:$0xff]
    %v1844 = vld [vmem:[#allocation2 + $0x728] sm:$0xff]
    %v1845 = vld [vmem:[#allocation2 + $0x730] sm:$0xff]
    %v1846 = vld [vmem:[#allocation2 + $0x738] sm:$0xff]
    %v1847 = vld [vmem:[#allocation2 + $0x740] sm:$0xff]
    %v1848 = vld [vmem:[#allocation2 + $0x748] sm:$0xff]
    %v1849 = vld [vmem:[#allocation2 + $0x750] sm:$0xff]
    %v1850 = vld [vmem:[#allocation2 + $0x758] sm:$0xff]
    %v1851 = vld [vmem:[#allocation2 + $0x760] sm:$0xff]
    %v1852 = vld [vmem:[#allocation2 + $0x768] sm:$0xff]
    %v1853 = vld [vmem:[#allocation2 + $0x770] sm:$0xff]
    %v1854 = vld [vmem:[#allocation2 + $0x778] sm:$0xff]
    %v1855 = vld [vmem:[#allocation2 + $0x780] sm:$0xff]
    %v1856 = vld [vmem:[#allocation2 + $0x788] sm:$0xff]
    %v1857 = vld [vmem:[#allocation2 + $0x790] sm:$0xff]
    %v1858 = vld [vmem:[#allocation2 + $0x798] sm:$0xff]
    %v1859 = vld [vmem:[#allocation2 + $0x7a0] sm:$0xff]
    %v1860 = vld [vmem:[#allocation2 + $0x7a8] sm:$0xff]
    %v1861 = vld [vmem:[#allocation2 + $0x7b0] sm:$0xff]
    %v1862 = vld [vmem:[#allocation2 + $0x7b8] sm:$0xff]
    %v1863 = vld [vmem:[#allocation2 + $0x7c0] sm:$0xff]
    %v1864 = vld [vmem:[#allocation2 + $0x7c8] sm:$0xff]
    %v1865 = vld [vmem:[#allocation2 + $0x7d0] sm:$0xff]
    %v1866 = vld [vmem:[#allocation2 + $0x7d8] sm:$0xff]
    %v1867 = vld [vmem:[#allocation2 + $0x7e0] sm:$0xff]
    %v1868 = vld [vmem:[#allocation2 + $0x7e8] sm:$0xff]
    %v1869 = vld [vmem:[#allocation2 + $0x7f0] sm:$0xff]
    %v1870 = vld [vmem:[#allocation2 + $0x7f8] sm:$0xff]
    %v1871 = vld [vmem:[#allocation2 + $0x800] sm:$0xff]
    %v1872 = vld [vmem:[#allocation2 + $0x808] sm:$0xff]
    %v1873 = vld [vmem:[#allocation2 + $0x810] sm:$0xff]
    %v1874 = vld [vmem:[#allocation2 + $0x818] sm:$0xff]
    %v1875 = vld [vmem:[#allocation2 + $0x820] sm:$0xff]
    %v1876 = vld [vmem:[#allocation2 + $0x828] sm:$0xff]
    %v1877 = vld [vmem:[#allocation2 + $0x830] sm:$0xff]
    %v1878 = vld [vmem:[#allocation2 + $0x838] sm:$0xff]
    %s1879 = scalar_lea.vmem [#allocation4], 4
    %v1880 = vld [vmem:[%s1879] ss:$8 sm:$0x3]
    %v1882 = vperm.slane %v1880, 0
    %v1883 = vperm.slane %v1880, 1
    %v1982 = vunpack.c.l.b16 %v1783
    %v1983 = vunpack.c.h.b16 %v1783
    %v1984 = vunpack.c.l.b16 %v1784
    %v1985 = vunpack.c.h.b16 %v1784
    %v1986 = vunpack.c.l.b16 %v1785
    %v1987 = vunpack.c.h.b16 %v1785
    %v1988 = vunpack.c.l.b16 %v1786
    %v1989 = vunpack.c.h.b16 %v1786
    %v1990 = vunpack.c.l.b16 %v1787
    %v1991 = vunpack.c.h.b16 %v1787
    %v1992 = vunpack.c.l.b16 %v1788
    %v1993 = vunpack.c.h.b16 %v1788
    %v1994 = vunpack.c.l.b16 %v1789
    %v1995 = vunpack.c.h.b16 %v1789
    %v1996 = vunpack.c.l.b16 %v1790
    %v1997 = vunpack.c.h.b16 %v1790
    %v1998 = vunpack.c.l.b16 %v1791
    %v1999 = vunpack.c.h.b16 %v1791
    %v2000 = vunpack.c.l.b16 %v1792
    %v2001 = vunpack.c.h.b16 %v1792
    %v2002 = vunpack.c.l.b16 %v1793
    %v2003 = vunpack.c.h.b16 %v1793
    %v2004 = vunpack.c.l.b16 %v1794
    %v2005 = vunpack.c.h.b16 %v1794
    %v2006 = vunpack.c.l.b16 %v1795
    %v2007 = vunpack.c.h.b16 %v1795
    %v2008 = vunpack.c.l.b16 %v1796
    %v2009 = vunpack.c.h.b16 %v1796
    %v2010 = vunpack.c.l.b16 %v1797
    %v2011 = vunpack.c.h.b16 %v1797
    %v2012 = vunpack.c.l.b16 %v1798
    %v2013 = vunpack.c.h.b16 %v1798
    %v2014 = vunpack.c.l.b16 %v1799
    %v2015 = vunpack.c.h.b16 %v1799
    %v2016 = vunpack.c.l.b16 %v1800
    %v2017 = vunpack.c.h.b16 %v1800
    %v2018 = vunpack.c.l.b16 %v1801
    %v2019 = vunpack.c.h.b16 %v1801
    %v2020 = vunpack.c.l.b16 %v1802
    %v2021 = vunpack.c.h.b16 %v1802
    %v2022 = vunpack.c.l.b16 %v1803
    %v2023 = vunpack.c.h.b16 %v1803
    %v2024 = vunpack.c.l.b16 %v1804
    %v2025 = vunpack.c.h.b16 %v1804
    %v2026 = vunpack.c.l.b16 %v1805
    %v2027 = vunpack.c.h.b16 %v1805
    %v2028 = vunpack.c.l.b16 %v1806
    %v2029 = vunpack.c.h.b16 %v1806
    %v2030 = vunpack.c.l.b16 %v1807
    %v2031 = vunpack.c.h.b16 %v1807
    %v2032 = vunpack.c.l.b16 %v1808
    %v2033 = vunpack.c.h.b16 %v1808
    %v2034 = vunpack.c.l.b16 %v1809
    %v2035 = vunpack.c.h.b16 %v1809
    %v2036 = vunpack.c.l.b16 %v1810
    %v2037 = vunpack.c.h.b16 %v1810
    %v2038 = vunpack.c.l.b16 %v1811
    %v2039 = vunpack.c.h.b16 %v1811
    %v2040 = vunpack.c.l.b16 %v1812
    %v2041 = vunpack.c.h.b16 %v1812
    %v2042 = vunpack.c.l.b16 %v1813
    %v2043 = vunpack.c.h.b16 %v1813
    %v2044 = vunpack.c.l.b16 %v1814
    %v2045 = vunpack.c.h.b16 %v1814
    %v2046 = vunpack.c.l.b16 %v1815
    %v2047 = vunpack.c.h.b16 %v1815
    %v2048 = vunpack.c.l.b16 %v1816
    %v2049 = vunpack.c.h.b16 %v1816
    %v2050 = vunpack.c.l.b16 %v1817
    %v2051 = vunpack.c.h.b16 %v1817
    %v2052 = vunpack.c.l.b16 %v1818
    %v2053 = vunpack.c.h.b16 %v1818
    %v2054 = vunpack.c.l.b16 %v1819
    %v2055 = vunpack.c.h.b16 %v1819
    %v2056 = vunpack.c.l.b16 %v1820
    %v2057 = vunpack.c.h.b16 %v1820
    %v2058 = vunpack.c.l.b16 %v1821
    %v2059 = vunpack.c.h.b16 %v1821
    %v2060 = vunpack.c.l.b16 %v1822
    %v2061 = vunpack.c.h.b16 %v1822
    %v2062 = vunpack.c.l.b16 %v1823
    %v2063 = vunpack.c.h.b16 %v1823
    %v2064 = vunpack.c.l.b16 %v1824
    %v2065 = vunpack.c.h.b16 %v1824
    %v2066 = vunpack.c.l.b16 %v1825
    %v2067 = vunpack.c.h.b16 %v1825
    %v2068 = vunpack.c.l.b16 %v1826
    %v2069 = vunpack.c.h.b16 %v1826
    %v2070 = vunpack.c.l.b16 %v1827
    %v2071 = vunpack.c.h.b16 %v1827
    %v2072 = vunpack.c.l.b16 %v1828
    %v2073 = vunpack.c.h.b16 %v1828
    %v2074 = vunpack.c.l.b16 %v1829
    %v2075 = vunpack.c.h.b16 %v1829
    %v2076 = vunpack.c.l.b16 %v1830
    %v2077 = vunpack.c.h.b16 %v1830
    %v2078 = vunpack.c.l.b16 %v1831
    %v2079 = vunpack.c.h.b16 %v1831
    %v2080 = vunpack.c.l.b16 %v1832
    %v2081 = vunpack.c.h.b16 %v1832
    %v2082 = vunpack.c.l.b16 %v1833
    %v2083 = vunpack.c.h.b16 %v1833
    %v2084 = vunpack.c.l.b16 %v1834
    %v2085 = vunpack.c.h.b16 %v1834
    %v2086 = vunpack.c.l.b16 %v1835
    %v2087 = vunpack.c.h.b16 %v1835
    %v2088 = vunpack.c.l.b16 %v1836
    %v2089 = vunpack.c.h.b16 %v1836
    %v2090 = vunpack.c.l.b16 %v1837
    %v2091 = vunpack.c.h.b16 %v1837
    %v2092 = vunpack.c.l.b16 %v1838
    %v2093 = vunpack.c.h.b16 %v1838
    %v2094 = vunpack.c.l.b16 %v1839
    %v2095 = vunpack.c.h.b16 %v1839
    %v2096 = vunpack.c.l.b16 %v1840
    %v2097 = vunpack.c.h.b16 %v1840
    %v2098 = vunpack.c.l.b16 %v1841
    %v2099 = vunpack.c.h.b16 %v1841
    %v2100 = vunpack.c.l.b16 %v1842
    %v2101 = vunpack.c.h.b16 %v1842
    %v2102 = vunpack.c.l.b16 %v1843
    %v2103 = vunpack.c.h.b16 %v1843
    %v2104 = vunpack.c.l.b16 %v1844
    %v2105 = vunpack.c.h.b16 %v1844
    %v2106 = vunpack.c.l.b16 %v1845
    %v2107 = vunpack.c.h.b16 %v1845
    %v2108 = vunpack.c.l.b16 %v1846
    %v2109 = vunpack.c.h.b16 %v1846
    %v2110 = vunpack.c.l.b16 %v1847
    %v2111 = vunpack.c.h.b16 %v1847
    %v2112 = vunpack.c.l.b16 %v1848
    %v2113 = vunpack.c.h.b16 %v1848
    %v2114 = vunpack.c.l.b16 %v1849
    %v2115 = vunpack.c.h.b16 %v1849
    %v2116 = vunpack.c.l.b16 %v1850
    %v2117 = vunpack.c.h.b16 %v1850
    %v2118 = vunpack.c.l.b16 %v1851
    %v2119 = vunpack.c.h.b16 %v1851
    %v2120 = vunpack.c.l.b16 %v1852
    %v2121 = vunpack.c.h.b16 %v1852
    %v2122 = vunpack.c.l.b16 %v1853
    %v2123 = vunpack.c.h.b16 %v1853
    %v2124 = vunpack.c.l.b16 %v1854
    %v2125 = vunpack.c.h.b16 %v1854
    %v2126 = vunpack.c.l.b16 %v1855
    %v2127 = vunpack.c.h.b16 %v1855
    %v2128 = vunpack.c.l.b16 %v1856
    %v2129 = vunpack.c.h.b16 %v1856
    %v2130 = vunpack.c.l.b16 %v1857
    %v2131 = vunpack.c.h.b16 %v1857
    %v2132 = vunpack.c.l.b16 %v1858
    %v2133 = vunpack.c.h.b16 %v1858
    %v2134 = vunpack.c.l.b16 %v1859
    %v2135 = vunpack.c.h.b16 %v1859
    %v2136 = vunpack.c.l.b16 %v1860
    %v2137 = vunpack.c.h.b16 %v1860
    %v2138 = vunpack.c.l.b16 %v1861
    %v2139 = vunpack.c.h.b16 %v1861
    %v2140 = vunpack.c.l.b16 %v1862
    %v2141 = vunpack.c.h.b16 %v1862
    %v2142 = vunpack.c.l.b16 %v1863
    %v2143 = vunpack.c.h.b16 %v1863
    %v2144 = vunpack.c.l.b16 %v1864
    %v2145 = vunpack.c.h.b16 %v1864
    %v2146 = vunpack.c.l.b16 %v1865
    %v2147 = vunpack.c.h.b16 %v1865
    %v2148 = vunpack.c.l.b16 %v1866
    %v2149 = vunpack.c.h.b16 %v1866
    %v2150 = vunpack.c.l.b16 %v1867
    %v2151 = vunpack.c.h.b16 %v1867
    %v2152 = vunpack.c.l.b16 %v1868
    %v2153 = vunpack.c.h.b16 %v1868
    %v2154 = vunpack.c.l.b16 %v1869
    %v2155 = vunpack.c.h.b16 %v1869
    %v2156 = vunpack.c.l.b16 %v1870
    %v2157 = vunpack.c.h.b16 %v1870
    %v2158 = vunpack.c.l.b16 %v1871
    %v2159 = vunpack.c.h.b16 %v1871
    %v2160 = vunpack.c.l.b16 %v1872
    %v2161 = vunpack.c.h.b16 %v1872
    %v2162 = vunpack.c.l.b16 %v1873
    %v2163 = vunpack.c.h.b16 %v1873
    %v2164 = vunpack.c.l.b16 %v1874
    %v2165 = vunpack.c.h.b16 %v1874
    %v2166 = vunpack.c.l.b16 %v1875
    %v2167 = vunpack.c.h.b16 %v1875
    %v2168 = vunpack.c.l.b16 %v1876
    %v2169 = vunpack.c.h.b16 %v1876
    %v2170 = vunpack.c.l.b16 %v1877
    %v2171 = vunpack.c.h.b16 %v1877
    %v2172 = vunpack.c.l.b16 %v1878
    %v2173 = vunpack.c.h.b16 %v1878
    %v2174 = vpack.c.b16 %v1984, %v1982
    %v2175 = vpack.c.b16 %v1985, %v1983
    %v2176 = vpack.c.b16 %v1988, %v1986
    %v2177 = vpack.c.b16 %v1989, %v1987
    %v2178 = vpack.c.b16 %v1992, %v1990
    %v2179 = vpack.c.b16 %v1993, %v1991
    %v2180 = vpack.c.b16 %v1996, %v1994
    %v2181 = vpack.c.b16 %v1997, %v1995
    %v2182 = vpack.c.b16 %v2000, %v1998
    %v2183 = vpack.c.b16 %v2001, %v1999
    %v2184 = vpack.c.b16 %v2004, %v2002
    %v2185 = vpack.c.b16 %v2005, %v2003
    %v2186 = vpack.c.b16 %v2008, %v2006
    %v2187 = vpack.c.b16 %v2009, %v2007
    %v2188 = vpack.c.b16 %v2012, %v2010
    %v2189 = vpack.c.b16 %v2013, %v2011
    %v2190 = vpack.c.b16 %v2016, %v2014
    %v2191 = vpack.c.b16 %v2017, %v2015
    %v2192 = vpack.c.b16 %v2020, %v2018
    %v2193 = vpack.c.b16 %v2021, %v2019
    %v2194 = vpack.c.b16 %v2024, %v2022
    %v2195 = vpack.c.b16 %v2025, %v2023
    %v2196 = vpack.c.b16 %v2028, %v2026
    %v2197 = vpack.c.b16 %v2029, %v2027
    %v2198 = vpack.c.b16 %v2032, %v2030
    %v2199 = vpack.c.b16 %v2033, %v2031
    %v2200 = vpack.c.b16 %v2036, %v2034
    %v2201 = vpack.c.b16 %v2037, %v2035
    %v2202 = vpack.c.b16 %v2040, %v2038
    %v2203 = vpack.c.b16 %v2041, %v2039
    %v2204 = vpack.c.b16 %v2044, %v2042
    %v2205 = vpack.c.b16 %v2045, %v2043
    %v2206 = vpack.c.b16 %v2048, %v2046
    %v2207 = vpack.c.b16 %v2049, %v2047
    %v2208 = vpack.c.b16 %v2052, %v2050
    %v2209 = vpack.c.b16 %v2053, %v2051
    %v2210 = vpack.c.b16 %v2056, %v2054
    %v2211 = vpack.c.b16 %v2057, %v2055
    %v2212 = vpack.c.b16 %v2060, %v2058
    %v2213 = vpack.c.b16 %v2061, %v2059
    %v2214 = vpack.c.b16 %v2064, %v2062
    %v2215 = vpack.c.b16 %v2065, %v2063
    %v2216 = vpack.c.b16 %v2068, %v2066
    %v2217 = vpack.c.b16 %v2069, %v2067
    %v2218 = vpack.c.b16 %v2072, %v2070
    %v2219 = vpack.c.b16 %v2073, %v2071
    %v2220 = vpack.c.b16 %v2076, %v2074
    %v2221 = vpack.c.b16 %v2077, %v2075
    %v2222 = vpack.c.b16 %v2080, %v2078
    %v2223 = vpack.c.b16 %v2081, %v2079
    %v2224 = vpack.c.b16 %v2084, %v2082
    %v2225 = vpack.c.b16 %v2085, %v2083
    %v2226 = vpack.c.b16 %v2088, %v2086
    %v2227 = vpack.c.b16 %v2089, %v2087
    %v2228 = vpack.c.b16 %v2092, %v2090
    %v2229 = vpack.c.b16 %v2093, %v2091
    %v2230 = vpack.c.b16 %v2096, %v2094
    %v2231 = vpack.c.b16 %v2097, %v2095
    %v2232 = vpack.c.b16 %v2100, %v2098
    %v2233 = vpack.c.b16 %v2101, %v2099
    %v2234 = vpack.c.b16 %v2104, %v2102
    %v2235 = vpack.c.b16 %v2105, %v2103
    %v2236 = vpack.c.b16 %v2108, %v2106
    %v2237 = vpack.c.b16 %v2109, %v2107
    %v2238 = vpack.c.b16 %v2112, %v2110
    %v2239 = vpack.c.b16 %v2113, %v2111
    %v2240 = vpack.c.b16 %v2116, %v2114
    %v2241 = vpack.c.b16 %v2117, %v2115
    %v2242 = vpack.c.b16 %v2120, %v2118
    %v2243 = vpack.c.b16 %v2121, %v2119
    %v2244 = vpack.c.b16 %v2124, %v2122
    %v2245 = vpack.c.b16 %v2125, %v2123
    %v2246 = vpack.c.b16 %v2128, %v2126
    %v2247 = vpack.c.b16 %v2129, %v2127
    %v2248 = vpack.c.b16 %v2132, %v2130
    %v2249 = vpack.c.b16 %v2133, %v2131
    %v2250 = vpack.c.b16 %v2136, %v2134
    %v2251 = vpack.c.b16 %v2137, %v2135
    %v2252 = vpack.c.b16 %v2140, %v2138
    %v2253 = vpack.c.b16 %v2141, %v2139
    %v2254 = vpack.c.b16 %v2144, %v2142
    %v2255 = vpack.c.b16 %v2145, %v2143
    %v2256 = vpack.c.b16 %v2148, %v2146
    %v2257 = vpack.c.b16 %v2149, %v2147
    %v2258 = vpack.c.b16 %v2152, %v2150
    %v2259 = vpack.c.b16 %v2153, %v2151
    %v2260 = vpack.c.b16 %v2156, %v2154
    %v2261 = vpack.c.b16 %v2157, %v2155
    %v2262 = vpack.c.b16 %v2160, %v2158
    %v2263 = vpack.c.b16 %v2161, %v2159
    %v2264 = vpack.c.b16 %v2164, %v2162
    %v2265 = vpack.c.b16 %v2165, %v2163
    %v2266 = vpack.c.b16 %v2168, %v2166
    %v2267 = vpack.c.b16 %v2169, %v2167
    %v2268 = vpack.c.b16 %v2172, %v2170
    %v2269 = vpack.c.b16 %v2173, %v2171
    %2366 = vmatpush.bf16.msra.mxu0 %v2188
    %2367 = vmatpush.bf16.msra.mxu0 %v2186
    %2368 = vmatpush.bf16.msra.mxu0 %v2184
    %2369 = vmatpush.bf16.msra.mxu0 %v2182
    %2370 = vmatpush.bf16.msra.mxu0 %v2180
    %2371 = vmatpush.bf16.msra.mxu0 %v2178
    %2372 = vmatpush.bf16.msra.mxu0 %v2176
    %2373 = vmatpush.bf16.msra.mxu0 %v2174
    %2374 = vmatmul.bf16.gmra.mxu0 %v1771
    %v2375 = vpop.f32.mrf.mxu0
    %v2376 = vadd.f32 %v1882, %v2375
    %v2377 = vpop.f32.mrf.mxu0
    %v2378 = vadd.f32 %v1882, %v2377
    %2379 = vmatmul.bf16.gmra.mxu0 %v1777
    %v2380 = vpop.f32.mrf.mxu0
    %v2381 = vadd.f32 %v1882, %v2380
    %v2382 = vpop.f32.mrf.mxu0
    %2383 = vdwg.mxu0
    %2384 = vmatpush.bf16.msra.mxu0 %v2204
    %2385 = vmatpush.bf16.msra.mxu0 %v2202
    %2386 = vmatpush.bf16.msra.mxu0 %v2200
    %2387 = vmatpush.bf16.msra.mxu0 %v2198
    %2388 = vmatpush.bf16.msra.mxu0 %v2196
    %2389 = vmatpush.bf16.msra.mxu0 %v2194
    %2390 = vmatpush.bf16.msra.mxu0 %v2192
    %2391 = vmatpush.bf16.msra.mxu0 %v2190
    %2392 = vmatmul.bf16.gmra.mxu0 %v1772
    %v2393 = vpop.f32.mrf.mxu0
    %v2394 = vadd.f32 %v2376, %v2393
    %v2395 = vpop.f32.mrf.mxu0
    %v2396 = vadd.f32 %v2378, %v2395
    %2397 = vmatmul.bf16.gmra.mxu0 %v1778
    %v2398 = vpop.f32.mrf.mxu0
    %v2399 = vadd.f32 %v2381, %v2398
    %v2400 = vpop.f32.mrf.mxu0
    %2401 = vdwg.mxu0
    %2402 = vmatpush.bf16.msra.mxu0 %v2220
    %2403 = vmatpush.bf16.msra.mxu0 %v2218
    %2404 = vmatpush.bf16.msra.mxu0 %v2216
    %2405 = vmatpush.bf16.msra.mxu0 %v2214
    %2406 = vmatpush.bf16.msra.mxu0 %v2212
    %2407 = vmatpush.bf16.msra.mxu0 %v2210
    %2408 = vmatpush.bf16.msra.mxu0 %v2208
    %2409 = vmatpush.bf16.msra.mxu0 %v2206
    %2410 = vmatmul.bf16.gmra.mxu0 %v1773
    %v2411 = vpop.f32.mrf.mxu0
    %v2412 = vadd.f32 %v2394, %v2411
    %v2413 = vpop.f32.mrf.mxu0
    %v2414 = vadd.f32 %v2396, %v2413
    %2415 = vmatmul.bf16.gmra.mxu0 %v1779
    %v2416 = vpop.f32.mrf.mxu0
    %v2417 = vadd.f32 %v2399, %v2416
    %v2418 = vpop.f32.mrf.mxu0
    %2419 = vdwg.mxu0
    %2420 = vmatpush.bf16.msra.mxu0 %v2236
    %2421 = vmatpush.bf16.msra.mxu0 %v2234
    %2422 = vmatpush.bf16.msra.mxu0 %v2232
    %2423 = vmatpush.bf16.msra.mxu0 %v2230
    %2424 = vmatpush.bf16.msra.mxu0 %v2228
    %2425 = vmatpush.bf16.msra.mxu0 %v2226
    %2426 = vmatpush.bf16.msra.mxu0 %v2224
    %2427 = vmatpush.bf16.msra.mxu0 %v2222
    %2428 = vmatmul.bf16.gmra.mxu0 %v1774
    %v2429 = vpop.f32.mrf.mxu0
    %v2430 = vadd.f32 %v2412, %v2429
    %v2431 = vpop.f32.mrf.mxu0
    %v2432 = vadd.f32 %v2414, %v2431
    %2433 = vmatmul.bf16.gmra.mxu0 %v1780
    %v2434 = vpop.f32.mrf.mxu0
    %v2435 = vadd.f32 %v2417, %v2434
    %v2436 = vpop.f32.mrf.mxu0
    %2437 = vdwg.mxu0
    %2438 = vmatpush.bf16.msra.mxu0 %v2252
    %2439 = vmatpush.bf16.msra.mxu0 %v2250
    %2440 = vmatpush.bf16.msra.mxu0 %v2248
    %2441 = vmatpush.bf16.msra.mxu0 %v2246
    %2442 = vmatpush.bf16.msra.mxu0 %v2244
    %2443 = vmatpush.bf16.msra.mxu0 %v2242
    %2444 = vmatpush.bf16.msra.mxu0 %v2240
    %2445 = vmatpush.bf16.msra.mxu0 %v2238
    %2446 = vmatmul.bf16.gmra.mxu0 %v1775
    %v2447 = vpop.f32.mrf.mxu0
    %v2448 = vadd.f32 %v2430, %v2447
    %v2449 = vpop.f32.mrf.mxu0
    %v2450 = vadd.f32 %v2432, %v2449
    %2451 = vmatmul.bf16.gmra.mxu0 %v1781
    %v2452 = vpop.f32.mrf.mxu0
    %v2453 = vadd.f32 %v2435, %v2452
    %v2454 = vpop.f32.mrf.mxu0
    %2455 = vdwg.mxu0
    %2456 = vmatpush.bf16.msra.mxu0 %v2268
    %2457 = vmatpush.bf16.msra.mxu0 %v2266
    %2458 = vmatpush.bf16.msra.mxu0 %v2264
    %2459 = vmatpush.bf16.msra.mxu0 %v2262
    %2460 = vmatpush.bf16.msra.mxu0 %v2260
    %2461 = vmatpush.bf16.msra.mxu0 %v2258
    %2462 = vmatpush.bf16.msra.mxu0 %v2256
    %2463 = vmatpush.bf16.msra.mxu0 %v2254
    %2464 = vmatmul.bf16.gmra.mxu0 %v1776
    %v2465 = vpop.f32.mrf.mxu0
    %v2466 = vadd.f32 %v2448, %v2465
    %v2467 = vpop.f32.mrf.mxu0
    %v2468 = vadd.f32 %v2450, %v2467
    %2469 = vmatmul.bf16.gmra.mxu0 %v1782
    %v2470 = vpop.f32.mrf.mxu0
    %v2471 = vadd.f32 %v2453, %v2470
    %v2472 = vpop.f32.mrf.mxu0
    %2473 = vdwg.mxu0
    %2474 = vmatpush.bf16.msra.mxu0 %v2189
    %2475 = vmatpush.bf16.msra.mxu0 %v2187
    %2476 = vmatpush.bf16.msra.mxu0 %v2185
    %2477 = vmatpush.bf16.msra.mxu0 %v2183
    %2478 = vmatpush.bf16.msra.mxu0 %v2181
    %2479 = vmatpush.bf16.msra.mxu0 %v2179
    %2480 = vmatpush.bf16.msra.mxu0 %v2177
    %2481 = vmatpush.bf16.msra.mxu0 %v2175
    %2482 = vmatmul.bf16.gmra.mxu0 %v1771
    %v2483 = vpop.f32.mrf.mxu0
    %v2484 = vadd.f32 %v1883, %v2483
    %v2485 = vpop.f32.mrf.mxu0
    %v2486 = vadd.f32 %v1883, %v2485
    %2487 = vmatmul.bf16.gmra.mxu0 %v1777
    %v2488 = vpop.f32.mrf.mxu0
    %v2489 = vadd.f32 %v1883, %v2488
    %v2490 = vpop.f32.mrf.mxu0
    %2491 = vdwg.mxu0
    %2492 = vmatpush.bf16.msra.mxu0 %v2205
    %2493 = vmatpush.bf16.msra.mxu0 %v2203
    %2494 = vmatpush.bf16.msra.mxu0 %v2201
    %2495 = vmatpush.bf16.msra.mxu0 %v2199
    %2496 = vmatpush.bf16.msra.mxu0 %v2197
    %2497 = vmatpush.bf16.msra.mxu0 %v2195
    %2498 = vmatpush.bf16.msra.mxu0 %v2193
    %2499 = vmatpush.bf16.msra.mxu0 %v2191
    %2500 = vmatmul.bf16.gmra.mxu0 %v1772
    %v2501 = vpop.f32.mrf.mxu0
    %v2502 = vadd.f32 %v2484, %v2501
    %v2503 = vpop.f32.mrf.mxu0
    %v2504 = vadd.f32 %v2486, %v2503
    %2505 = vmatmul.bf16.gmra.mxu0 %v1778
    %v2506 = vpop.f32.mrf.mxu0
    %v2507 = vadd.f32 %v2489, %v2506
    %v2508 = vpop.f32.mrf.mxu0
    %2509 = vdwg.mxu0
    %2510 = vmatpush.bf16.msra.mxu0 %v2221
    %2511 = vmatpush.bf16.msra.mxu0 %v2219
    %2512 = vmatpush.bf16.msra.mxu0 %v2217
    %2513 = vmatpush.bf16.msra.mxu0 %v2215
    %2514 = vmatpush.bf16.msra.mxu0 %v2213
    %2515 = vmatpush.bf16.msra.mxu0 %v2211
    %2516 = vmatpush.bf16.msra.mxu0 %v2209
    %2517 = vmatpush.bf16.msra.mxu0 %v2207
    %2518 = vmatmul.bf16.gmra.mxu0 %v1773
    %v2519 = vpop.f32.mrf.mxu0
    %v2520 = vadd.f32 %v2502, %v2519
    %v2521 = vpop.f32.mrf.mxu0
    %v2522 = vadd.f32 %v2504, %v2521
    %2523 = vmatmul.bf16.gmra.mxu0 %v1779
    %v2524 = vpop.f32.mrf.mxu0
    %v2525 = vadd.f32 %v2507, %v2524
    %v2526 = vpop.f32.mrf.mxu0
    %2527 = vdwg.mxu0
    %2528 = vmatpush.bf16.msra.mxu0 %v2237
    %2529 = vmatpush.bf16.msra.mxu0 %v2235
    %2530 = vmatpush.bf16.msra.mxu0 %v2233
    %2531 = vmatpush.bf16.msra.mxu0 %v2231
    %2532 = vmatpush.bf16.msra.mxu0 %v2229
    %2533 = vmatpush.bf16.msra.mxu0 %v2227
    %2534 = vmatpush.bf16.msra.mxu0 %v2225
    %2535 = vmatpush.bf16.msra.mxu0 %v2223
    %2536 = vmatmul.bf16.gmra.mxu0 %v1774
    %v2537 = vpop.f32.mrf.mxu0
    %v2538 = vadd.f32 %v2520, %v2537
    %v2539 = vpop.f32.mrf.mxu0
    %v2540 = vadd.f32 %v2522, %v2539
    %2541 = vmatmul.bf16.gmra.mxu0 %v1780
    %v2542 = vpop.f32.mrf.mxu0
    %v2543 = vadd.f32 %v2525, %v2542
    %v2544 = vpop.f32.mrf.mxu0
    %2545 = vdwg.mxu0
    %2546 = vmatpush.bf16.msra.mxu0 %v2253
    %2547 = vmatpush.bf16.msra.mxu0 %v2251
    %2548 = vmatpush.bf16.msra.mxu0 %v2249
    %2549 = vmatpush.bf16.msra.mxu0 %v2247
    %2550 = vmatpush.bf16.msra.mxu0 %v2245
    %2551 = vmatpush.bf16.msra.mxu0 %v2243
    %2552 = vmatpush.bf16.msra.mxu0 %v2241
    %2553 = vmatpush.bf16.msra.mxu0 %v2239
    %2554 = vmatmul.bf16.gmra.mxu0 %v1775
    %v2555 = vpop.f32.mrf.mxu0
    %v2556 = vadd.f32 %v2538, %v2555
    %v2557 = vpop.f32.mrf.mxu0
    %v2558 = vadd.f32 %v2540, %v2557
    %2559 = vmatmul.bf16.gmra.mxu0 %v1781
    %v2560 = vpop.f32.mrf.mxu0
    %v2561 = vadd.f32 %v2543, %v2560
    %v2562 = vpop.f32.mrf.mxu0
    %2563 = vdwg.mxu0
    %2564 = vmatpush.bf16.msra.mxu0 %v2269
    %2565 = vmatpush.bf16.msra.mxu0 %v2267
    %2566 = vmatpush.bf16.msra.mxu0 %v2265
    %2567 = vmatpush.bf16.msra.mxu0 %v2263
    %2568 = vmatpush.bf16.msra.mxu0 %v2261
    %2569 = vmatpush.bf16.msra.mxu0 %v2259
    %2570 = vmatpush.bf16.msra.mxu0 %v2257
    %2571 = vmatpush.bf16.msra.mxu0 %v2255
    %2572 = vmatmul.bf16.gmra.mxu0 %v1776
    %v2573 = vpop.f32.mrf.mxu0
    %v2574 = vadd.f32 %v2556, %v2573
    %v2575 = vpop.f32.mrf.mxu0
    %v2576 = vadd.f32 %v2558, %v2575
    %2577 = vmatmul.bf16.gmra.mxu0 %v1782
    %v2578 = vpop.f32.mrf.mxu0
    %v2579 = vadd.f32 %v2561, %v2578
    %v2580 = vpop.f32.mrf.mxu0
    %2581 = vdwg.mxu0
    %v2582 = vmax.f32 %v2466, 0.0
    %v2583 = vmax.f32 %v2574, 0.0
    %v2584 = vmax.f32 %v2468, 0.0
    %v2585 = vmax.f32 %v2576, 0.0
    %v2586 = vmax.f32 %v2471, 0.0
    %v2587 = vmax.f32 %v2579, 0.0
    %v2588 = vpack.c.bf16 %v2582, %v2582
    %v2589 = vpack.c.bf16 %v2583, %v2583
    %v2590 = vpack.c.bf16 %v2584, %v2584
    %v2591 = vpack.c.bf16 %v2585, %v2585
    %v2592 = vpack.c.bf16 %v2586, %v2586
    %v2593 = vpack.c.bf16 %v2587, %v2587
    %v2594 = vld [vmem:[#allocation2 + $0x840] sm:$0xf]
    %v2595 = vld [vmem:[#allocation2 + $0x848] sm:$0xf]
    %v2596 = vld [vmem:[#allocation2 + $0x850] sm:$0xf]
    %v2597 = vld [vmem:[#allocation2 + $0x858] sm:$0xf]
    %v2598 = vld [vmem:[#allocation2 + $0x860] sm:$0xf]
    %v2599 = vld [vmem:[#allocation2 + $0x868] sm:$0xf]
    %v2600 = vld [vmem:[#allocation2 + $0x870] sm:$0xf]
    %v2601 = vld [vmem:[#allocation2 + $0x878] sm:$0xf]
    %v2602 = vld [vmem:[#allocation2 + $0x880] sm:$0xf]
    %v2603 = vld [vmem:[#allocation2 + $0x888] sm:$0xf]
    %v2604 = vld [vmem:[#allocation2 + $0x890] sm:$0xf]
    %v2605 = vld [vmem:[#allocation2 + $0x898] sm:$0xf]
    %v2606 = vld [vmem:[#allocation2 + $0x8a0] sm:$0xf]
    %v2607 = vld [vmem:[#allocation2 + $0x8a8] sm:$0xf]
    %v2608 = vld [vmem:[#allocation2 + $0x8b0] sm:$0xf]
    %v2609 = vld [vmem:[#allocation2 + $0x8b8] sm:$0xf]
    %v2610 = vld [vmem:[#allocation2 + $0x8c0] sm:$0xf]
    %v2611 = vld [vmem:[#allocation2 + $0x8c8] sm:$0xf]
    %v2612 = vld [vmem:[#allocation2 + $0x8d0] sm:$0xf]
    %v2613 = vld [vmem:[#allocation2 + $0x8d8] sm:$0xf]
    %v2614 = vld [vmem:[#allocation2 + $0x8e0] sm:$0xf]
    %v2615 = vld [vmem:[#allocation2 + $0x8e8] sm:$0xf]
    %v2616 = vld [vmem:[#allocation2 + $0x8f0] sm:$0xf]
    %v2617 = vld [vmem:[#allocation2 + $0x8f8] sm:$0xf]
    %v2618 = vld [vmem:[#allocation2 + $0x900] sm:$0xf]
    %v2619 = vld [vmem:[#allocation2 + $0x908] sm:$0xf]
    %v2620 = vld [vmem:[#allocation2 + $0x910] sm:$0xf]
    %v2621 = vld [vmem:[#allocation2 + $0x918] sm:$0xf]
    %v2622 = vld [vmem:[#allocation2 + $0x920] sm:$0xf]
    %v2623 = vld [vmem:[#allocation2 + $0x928] sm:$0xf]
    %v2624 = vld [vmem:[#allocation2 + $0x930] sm:$0xf]
    %v2625 = vld [vmem:[#allocation2 + $0x938] sm:$0xf]
    %v2626 = vld [vmem:[#allocation2 + $0x940] sm:$0xf]
    %v2627 = vld [vmem:[#allocation2 + $0x948] sm:$0xf]
    %v2628 = vld [vmem:[#allocation2 + $0x950] sm:$0xf]
    %v2629 = vld [vmem:[#allocation2 + $0x958] sm:$0xf]
    %v2630 = vld [vmem:[#allocation2 + $0x960] sm:$0xf]
    %v2631 = vld [vmem:[#allocation2 + $0x968] sm:$0xf]
    %v2632 = vld [vmem:[#allocation2 + $0x970] sm:$0xf]
    %v2633 = vld [vmem:[#allocation2 + $0x978] sm:$0xf]
    %v2634 = vld [vmem:[#allocation2 + $0x980] sm:$0xf]
    %v2635 = vld [vmem:[#allocation2 + $0x988] sm:$0xf]
    %v2636 = vld [vmem:[#allocation2 + $0x990] sm:$0xf]
    %v2637 = vld [vmem:[#allocation2 + $0x998] sm:$0xf]
    %v2638 = vld [vmem:[#allocation2 + $0x9a0] sm:$0xf]
    %v2639 = vld [vmem:[#allocation2 + $0x9a8] sm:$0xf]
    %v2640 = vld [vmem:[#allocation2 + $0x9b0] sm:$0xf]
    %v2641 = vld [vmem:[#allocation2 + $0x9b8] sm:$0xf]
    %v2642 = vld [vmem:[#allocation2 + $0x9c0] sm:$0xf]
    %v2643 = vld [vmem:[#allocation2 + $0x9c8] sm:$0xf]
    %v2644 = vld [vmem:[#allocation2 + $0x9d0] sm:$0xf]
    %v2645 = vld [vmem:[#allocation2 + $0x9d8] sm:$0xf]
    %v2646 = vld [vmem:[#allocation2 + $0x9e0] sm:$0xf]
    %v2647 = vld [vmem:[#allocation2 + $0x9e8] sm:$0xf]
    %v2648 = vld [vmem:[#allocation2 + $0x9f0] sm:$0xf]
    %v2649 = vld [vmem:[#allocation2 + $0x9f8] sm:$0xf]
    %v2650 = vld [vmem:[#allocation2 + $0xa00] sm:$0xf]
    %v2651 = vld [vmem:[#allocation2 + $0xa08] sm:$0xf]
    %v2652 = vld [vmem:[#allocation2 + $0xa10] sm:$0xf]
    %v2653 = vld [vmem:[#allocation2 + $0xa18] sm:$0xf]
    %v2654 = vld [vmem:[#allocation2 + $0xa20] sm:$0xf]
    %v2655 = vld [vmem:[#allocation2 + $0xa28] sm:$0xf]
    %v2656 = vld [vmem:[#allocation2 + $0xa30] sm:$0xf]
    %v2657 = vld [vmem:[#allocation2 + $0xa38] sm:$0xf]
    %v2658 = vld [vmem:[#allocation2 + $0xa40] sm:$0xf]
    %v2659 = vld [vmem:[#allocation2 + $0xa48] sm:$0xf]
    %v2660 = vld [vmem:[#allocation2 + $0xa50] sm:$0xf]
    %v2661 = vld [vmem:[#allocation2 + $0xa58] sm:$0xf]
    %v2662 = vld [vmem:[#allocation2 + $0xa60] sm:$0xf]
    %v2663 = vld [vmem:[#allocation2 + $0xa68] sm:$0xf]
    %v2664 = vld [vmem:[#allocation2 + $0xa70] sm:$0xf]
    %v2665 = vld [vmem:[#allocation2 + $0xa78] sm:$0xf]
    %v2666 = vld [vmem:[#allocation2 + $0xa80] sm:$0xf]
    %v2667 = vld [vmem:[#allocation2 + $0xa88] sm:$0xf]
    %v2668 = vld [vmem:[#allocation2 + $0xa90] sm:$0xf]
    %v2669 = vld [vmem:[#allocation2 + $0xa98] sm:$0xf]
    %v2670 = vld [vmem:[#allocation2 + $0xaa0] sm:$0xf]
    %v2671 = vld [vmem:[#allocation2 + $0xaa8] sm:$0xf]
    %v2672 = vld [vmem:[#allocation2 + $0xab0] sm:$0xf]
    %v2673 = vld [vmem:[#allocation2 + $0xab8] sm:$0xf]
    %v2674 = vld [vmem:[#allocation2 + $0xac0] sm:$0xf]
    %v2675 = vld [vmem:[#allocation2 + $0xac8] sm:$0xf]
    %v2676 = vld [vmem:[#allocation2 + $0xad0] sm:$0xf]
    %v2677 = vld [vmem:[#allocation2 + $0xad8] sm:$0xf]
    %v2678 = vld [vmem:[#allocation2 + $0xae0] sm:$0xf]
    %v2679 = vld [vmem:[#allocation2 + $0xae8] sm:$0xf]
    %v2680 = vld [vmem:[#allocation2 + $0xaf0] sm:$0xf]
    %v2681 = vld [vmem:[#allocation2 + $0xaf8] sm:$0xf]
    %v2682 = vld [vmem:[#allocation2 + $0xb00] sm:$0xf]
    %v2683 = vld [vmem:[#allocation2 + $0xb08] sm:$0xf]
    %v2684 = vld [vmem:[#allocation2 + $0xb10] sm:$0xf]
    %v2685 = vld [vmem:[#allocation2 + $0xb18] sm:$0xf]
    %v2686 = vld [vmem:[#allocation2 + $0xb20] sm:$0xf]
    %v2687 = vld [vmem:[#allocation2 + $0xb28] sm:$0xf]
    %v2688 = vld [vmem:[#allocation2 + $0xb30] sm:$0xf]
    %v2689 = vld [vmem:[#allocation2 + $0xb38] sm:$0xf]
    %v2690 = vld [vmem:[#allocation4 + $0x5] ss:$0 sm:$0xff]
    %v2787 = vunpack.c.l.b16 %v2594
    %v2788 = vunpack.c.l.b16 %v2595
    %v2789 = vunpack.c.l.b16 %v2596
    %v2790 = vunpack.c.l.b16 %v2597
    %v2791 = vunpack.c.l.b16 %v2598
    %v2792 = vunpack.c.l.b16 %v2599
    %v2793 = vunpack.c.l.b16 %v2600
    %v2794 = vunpack.c.l.b16 %v2601
    %v2795 = vunpack.c.l.b16 %v2602
    %v2796 = vunpack.c.l.b16 %v2603
    %v2797 = vunpack.c.l.b16 %v2604
    %v2798 = vunpack.c.l.b16 %v2605
    %v2799 = vunpack.c.l.b16 %v2606
    %v2800 = vunpack.c.l.b16 %v2607
    %v2801 = vunpack.c.l.b16 %v2608
    %v2802 = vunpack.c.l.b16 %v2609
    %v2803 = vunpack.c.l.b16 %v2610
    %v2804 = vunpack.c.l.b16 %v2611
    %v2805 = vunpack.c.l.b16 %v2612
    %v2806 = vunpack.c.l.b16 %v2613
    %v2807 = vunpack.c.l.b16 %v2614
    %v2808 = vunpack.c.l.b16 %v2615
    %v2809 = vunpack.c.l.b16 %v2616
    %v2810 = vunpack.c.l.b16 %v2617
    %v2811 = vunpack.c.l.b16 %v2618
    %v2812 = vunpack.c.l.b16 %v2619
    %v2813 = vunpack.c.l.b16 %v2620
    %v2814 = vunpack.c.l.b16 %v2621
    %v2815 = vunpack.c.l.b16 %v2622
    %v2816 = vunpack.c.l.b16 %v2623
    %v2817 = vunpack.c.l.b16 %v2624
    %v2818 = vunpack.c.l.b16 %v2625
    %v2819 = vunpack.c.l.b16 %v2626
    %v2820 = vunpack.c.l.b16 %v2627
    %v2821 = vunpack.c.l.b16 %v2628
    %v2822 = vunpack.c.l.b16 %v2629
    %v2823 = vunpack.c.l.b16 %v2630
    %v2824 = vunpack.c.l.b16 %v2631
    %v2825 = vunpack.c.l.b16 %v2632
    %v2826 = vunpack.c.l.b16 %v2633
    %v2827 = vunpack.c.l.b16 %v2634
    %v2828 = vunpack.c.l.b16 %v2635
    %v2829 = vunpack.c.l.b16 %v2636
    %v2830 = vunpack.c.l.b16 %v2637
    %v2831 = vunpack.c.l.b16 %v2638
    %v2832 = vunpack.c.l.b16 %v2639
    %v2833 = vunpack.c.l.b16 %v2640
    %v2834 = vunpack.c.l.b16 %v2641
    %v2835 = vunpack.c.l.b16 %v2642
    %v2836 = vunpack.c.l.b16 %v2643
    %v2837 = vunpack.c.l.b16 %v2644
    %v2838 = vunpack.c.l.b16 %v2645
    %v2839 = vunpack.c.l.b16 %v2646
    %v2840 = vunpack.c.l.b16 %v2647
    %v2841 = vunpack.c.l.b16 %v2648
    %v2842 = vunpack.c.l.b16 %v2649
    %v2843 = vunpack.c.l.b16 %v2650
    %v2844 = vunpack.c.l.b16 %v2651
    %v2845 = vunpack.c.l.b16 %v2652
    %v2846 = vunpack.c.l.b16 %v2653
    %v2847 = vunpack.c.l.b16 %v2654
    %v2848 = vunpack.c.l.b16 %v2655
    %v2849 = vunpack.c.l.b16 %v2656
    %v2850 = vunpack.c.l.b16 %v2657
    %v2851 = vunpack.c.l.b16 %v2658
    %v2852 = vunpack.c.l.b16 %v2659
    %v2853 = vunpack.c.l.b16 %v2660
    %v2854 = vunpack.c.l.b16 %v2661
    %v2855 = vunpack.c.l.b16 %v2662
    %v2856 = vunpack.c.l.b16 %v2663
    %v2857 = vunpack.c.l.b16 %v2664
    %v2858 = vunpack.c.l.b16 %v2665
    %v2859 = vunpack.c.l.b16 %v2666
    %v2860 = vunpack.c.l.b16 %v2667
    %v2861 = vunpack.c.l.b16 %v2668
    %v2862 = vunpack.c.l.b16 %v2669
    %v2863 = vunpack.c.l.b16 %v2670
    %v2864 = vunpack.c.l.b16 %v2671
    %v2865 = vunpack.c.l.b16 %v2672
    %v2866 = vunpack.c.l.b16 %v2673
    %v2867 = vunpack.c.l.b16 %v2674
    %v2868 = vunpack.c.l.b16 %v2675
    %v2869 = vunpack.c.l.b16 %v2676
    %v2870 = vunpack.c.l.b16 %v2677
    %v2871 = vunpack.c.l.b16 %v2678
    %v2872 = vunpack.c.l.b16 %v2679
    %v2873 = vunpack.c.l.b16 %v2680
    %v2874 = vunpack.c.l.b16 %v2681
    %v2875 = vunpack.c.l.b16 %v2682
    %v2876 = vunpack.c.l.b16 %v2683
    %v2877 = vunpack.c.l.b16 %v2684
    %v2878 = vunpack.c.l.b16 %v2685
    %v2879 = vunpack.c.l.b16 %v2686
    %v2880 = vunpack.c.l.b16 %v2687
    %v2881 = vunpack.c.l.b16 %v2688
    %v2882 = vunpack.c.l.b16 %v2689
    %v2883 = vpack.c.b16 %v2788, %v2787
    %v2884 = vpack.c.b16 %v2790, %v2789
    %v2885 = vpack.c.b16 %v2792, %v2791
    %v2886 = vpack.c.b16 %v2794, %v2793
    %v2887 = vpack.c.b16 %v2796, %v2795
    %v2888 = vpack.c.b16 %v2798, %v2797
    %v2889 = vpack.c.b16 %v2800, %v2799
    %v2890 = vpack.c.b16 %v2802, %v2801
    %v2891 = vpack.c.b16 %v2804, %v2803
    %v2892 = vpack.c.b16 %v2806, %v2805
    %v2893 = vpack.c.b16 %v2808, %v2807
    %v2894 = vpack.c.b16 %v2810, %v2809
    %v2895 = vpack.c.b16 %v2812, %v2811
    %v2896 = vpack.c.b16 %v2814, %v2813
    %v2897 = vpack.c.b16 %v2816, %v2815
    %v2898 = vpack.c.b16 %v2818, %v2817
    %v2899 = vpack.c.b16 %v2820, %v2819
    %v2900 = vpack.c.b16 %v2822, %v2821
    %v2901 = vpack.c.b16 %v2824, %v2823
    %v2902 = vpack.c.b16 %v2826, %v2825
    %v2903 = vpack.c.b16 %v2828, %v2827
    %v2904 = vpack.c.b16 %v2830, %v2829
    %v2905 = vpack.c.b16 %v2832, %v2831
    %v2906 = vpack.c.b16 %v2834, %v2833
    %v2907 = vpack.c.b16 %v2836, %v2835
    %v2908 = vpack.c.b16 %v2838, %v2837
    %v2909 = vpack.c.b16 %v2840, %v2839
    %v2910 = vpack.c.b16 %v2842, %v2841
    %v2911 = vpack.c.b16 %v2844, %v2843
    %v2912 = vpack.c.b16 %v2846, %v2845
    %v2913 = vpack.c.b16 %v2848, %v2847
    %v2914 = vpack.c.b16 %v2850, %v2849
    %v2915 = vpack.c.b16 %v2852, %v2851
    %v2916 = vpack.c.b16 %v2854, %v2853
    %v2917 = vpack.c.b16 %v2856, %v2855
    %v2918 = vpack.c.b16 %v2858, %v2857
    %v2919 = vpack.c.b16 %v2860, %v2859
    %v2920 = vpack.c.b16 %v2862, %v2861
    %v2921 = vpack.c.b16 %v2864, %v2863
    %v2922 = vpack.c.b16 %v2866, %v2865
    %v2923 = vpack.c.b16 %v2868, %v2867
    %v2924 = vpack.c.b16 %v2870, %v2869
    %v2925 = vpack.c.b16 %v2872, %v2871
    %v2926 = vpack.c.b16 %v2874, %v2873
    %v2927 = vpack.c.b16 %v2876, %v2875
    %v2928 = vpack.c.b16 %v2878, %v2877
    %v2929 = vpack.c.b16 %v2880, %v2879
    %v2930 = vpack.c.b16 %v2882, %v2881
    %2979 = vmatpush.bf16.msra.mxu0 %v2890
    %2980 = vmatpush.bf16.msra.mxu0 %v2889
    %2981 = vmatpush.bf16.msra.mxu0 %v2888
    %2982 = vmatpush.bf16.msra.mxu0 %v2887
    %2983 = vmatpush.bf16.msra.mxu0 %v2886
    %2984 = vmatpush.bf16.msra.mxu0 %v2885
    %2985 = vmatpush.bf16.msra.mxu0 %v2884
    %2986 = vmatpush.bf16.msra.mxu0 %v2883
    %2987 = vmatmul.bf16.gmra.mxu0 %v2588
    %v2988 = vpop.f32.mrf.mxu0
    %v2989 = vadd.f32 %v2690, %v2988
    %v2990 = vpop.f32.mrf.mxu0
    %2991 = vdwg.mxu0
    %2992 = vmatpush.bf16.msra.mxu0 %v2898
    %2993 = vmatpush.bf16.msra.mxu0 %v2897
    %2994 = vmatpush.bf16.msra.mxu0 %v2896
    %2995 = vmatpush.bf16.msra.mxu0 %v2895
    %2996 = vmatpush.bf16.msra.mxu0 %v2894
    %2997 = vmatpush.bf16.msra.mxu0 %v2893
    %2998 = vmatpush.bf16.msra.mxu0 %v2892
    %2999 = vmatpush.bf16.msra.mxu0 %v2891
    %3000 = vmatmul.bf16.gmra.mxu0 %v2589
    %v3001 = vpop.f32.mrf.mxu0
    %v3002 = vadd.f32 %v2989, %v3001
    %v3003 = vpop.f32.mrf.mxu0
    %3004 = vdwg.mxu0
    %3005 = vmatpush.bf16.msra.mxu0 %v2906
    %3006 = vmatpush.bf16.msra.mxu0 %v2905
    %3007 = vmatpush.bf16.msra.mxu0 %v2904
    %3008 = vmatpush.bf16.msra.mxu0 %v2903
    %3009 = vmatpush.bf16.msra.mxu0 %v2902
    %3010 = vmatpush.bf16.msra.mxu0 %v2901
    %3011 = vmatpush.bf16.msra.mxu0 %v2900
    %3012 = vmatpush.bf16.msra.mxu0 %v2899
    %3013 = vmatmul.bf16.gmra.mxu0 %v2590
    %v3014 = vpop.f32.mrf.mxu0
    %v3015 = vadd.f32 %v3002, %v3014
    %v3016 = vpop.f32.mrf.mxu0
    %3017 = vdwg.mxu0
    %3018 = vmatpush.bf16.msra.mxu0 %v2914
    %3019 = vmatpush.bf16.msra.mxu0 %v2913
    %3020 = vmatpush.bf16.msra.mxu0 %v2912
    %3021 = vmatpush.bf16.msra.mxu0 %v2911
    %3022 = vmatpush.bf16.msra.mxu0 %v2910
    %3023 = vmatpush.bf16.msra.mxu0 %v2909
    %3024 = vmatpush.bf16.msra.mxu0 %v2908
    %3025 = vmatpush.bf16.msra.mxu0 %v2907
    %3026 = vmatmul.bf16.gmra.mxu0 %v2591
    %v3027 = vpop.f32.mrf.mxu0
    %v3028 = vadd.f32 %v3015, %v3027
    %v3029 = vpop.f32.mrf.mxu0
    %3030 = vdwg.mxu0
    %3031 = vmatpush.bf16.msra.mxu0 %v2922
    %3032 = vmatpush.bf16.msra.mxu0 %v2921
    %3033 = vmatpush.bf16.msra.mxu0 %v2920
    %3034 = vmatpush.bf16.msra.mxu0 %v2919
    %3035 = vmatpush.bf16.msra.mxu0 %v2918
    %3036 = vmatpush.bf16.msra.mxu0 %v2917
    %3037 = vmatpush.bf16.msra.mxu0 %v2916
    %3038 = vmatpush.bf16.msra.mxu0 %v2915
    %3039 = vmatmul.bf16.gmra.mxu0 %v2592
    %v3040 = vpop.f32.mrf.mxu0
    %v3041 = vadd.f32 %v3028, %v3040
    %v3042 = vpop.f32.mrf.mxu0
    %3043 = vdwg.mxu0
    %3044 = vmatpush.bf16.msra.mxu0 %v2930
    %3045 = vmatpush.bf16.msra.mxu0 %v2929
    %3046 = vmatpush.bf16.msra.mxu0 %v2928
    %3047 = vmatpush.bf16.msra.mxu0 %v2927
    %3048 = vmatpush.bf16.msra.mxu0 %v2926
    %3049 = vmatpush.bf16.msra.mxu0 %v2925
    %3050 = vmatpush.bf16.msra.mxu0 %v2924
    %3051 = vmatpush.bf16.msra.mxu0 %v2923
    %3052 = vmatmul.bf16.gmra.mxu0 %v2593
    %v3053 = vpop.f32.mrf.mxu0
    %v3054 = vadd.f32 %v3041, %v3053
    %v3055 = vpop.f32.mrf.mxu0
    %3056 = vdwg.mxu0
    %v3057 = vtanh.pop %v3054
    %3058 = vst [vmem:[%s3] sm:$0xff] %v3057
    // Predicated region
    $region22: #{net2_forward.1} parent=1 // pred_check
      _
    $region23: #{net2_forward.1} parent=1 // pred_check_branch
      %3060 = sbr.rel (0) target = $region25
    $region24: #{net2_forward.1} parent=1 // pred_region
      _
    $region25: #{net2_forward.1} parent=1 // pred_fallthru
      _
    // Predicated region
    $region26: #{net2_forward.1} parent=1 // pred_check
      _
    $region27: #{net2_forward.1} parent=1 // pred_check_branch
      %3062 = sbr.rel (0) target = $region29
    $region28: #{net2_forward.1} parent=1 // pred_region
      _
    $region29: #{net2_forward.1} parent=1 // pred_fallthru
      _
    %3063 = vsyncpa [#allocation3], 1
    %3064 = vsyncpa [#allocation5], 1

</llo_original>
